<compile_context>
chip_gen: v5e
topology: v5e:2x2
jax: 0.10.0
libtpu: 0.0.40
codegen_flags: <defaults>
</compile_context>

<pallas_src>
import functools

import jax
import jax.numpy as jnp
from jax import lax
from jax.experimental import pallas as pl
from jax.experimental.pallas import tpu as pltpu

EPS = 1e-5   # nn.GroupNorm default eps

# 3x3 taps in (sy, sx) order matching the weight reshape order (ky*3 + kx).
_TAPS = tuple((dy - 1, dx - 1) for dy in range(3) for dx in range(3))
_OFF_CENTER = tuple(t for t in _TAPS if t != (0, 0))


def _round_up8(c):
    return ((c + 7) // 8) * 8


def _conv_gn_relu(x, patches_ref, w_ref, gamma_ref, beta_ref, mbool, *, W):
    """One ConvNormActBlock on a single lane-dense image held as (Cp, H*W).

    3x3 'same' conv (roll-based im2col -> one MXU contraction), per-channel
    GroupNorm (single-pass f32 stats, folded affine), ReLU.  Conv bias omitted:
    with num_groups == C_out the GroupNorm mean subtraction cancels it exactly.
    """
    cp, hw = x.shape
    mi = 0
    for k, (sy, sx) in enumerate(_TAPS):
        d = sy * W + sx
        # out[p] = x[p + d]  <=>  jnp.roll/pltpu.roll with shift = (-d) % hw.
        v = x if d == 0 else pltpu.roll(x, shift=(-d) % hw, axis=1)
        if (sy, sx) != (0, 0):
            # SELECT (not multiply): wrapped lanes carry data from the other
            # side of the image; zero them exactly like 'same' zero padding.
            v = jnp.where(mbool[mi:mi + 1, :], v, 0.0)
            mi += 1
        patches_ref[k * cp:(k + 1) * cp, :] = v      # full 8-sublane tile store

    # Single MXU contraction: (C_out, 9*Cp) @ (9*Cp, HW) -> (C_out, HW).
    y = lax.dot_general(
        w_ref[...], patches_ref[...],
        dimension_numbers=(((1,), (0,)), ((), ())),
        preferred_element_type=jnp.float32)

    # GroupNorm(num_groups=C_out): per-channel stats over HW, one pass, f32.
    inv_hw = 1.0 / hw
    s1 = jnp.sum(y, axis=1, keepdims=True)
    s2 = jnp.sum(y * y, axis=1, keepdims=True)
    mean = s1 * inv_hw
    var = jnp.maximum(s2 * inv_hw - mean * mean, 0.0)   # clamp cancellation
    inv = lax.rsqrt(var + EPS)                          # EUP slot
    a = inv * gamma_ref[...]                            # (C, 1)
    b = beta_ref[...] - mean * a                        # (C, 1)
    return jnp.maximum(y * a + b, 0.0)                  # folded affine + ReLU


def _unet_block_kernel(x_ref, m_ref, w1_ref, g1_ref, b1_ref,
                       w2_ref, g2_ref, b2_ref, out_ref,
                       patches1, patches2, *, W):
    mbool = m_ref[...] != 0.0          # (8, HW) boundary masks, shared by layers
    h = x_ref[0]                       # (Cp_in, HW) lane-dense image
    h = _conv_gn_relu(h, patches1, w1_ref, g1_ref, b1_ref, mbool, W=W)
    h = _conv_gn_relu(h, patches2, w2_ref, g2_ref, b2_ref, mbool, W=W)
    out_ref[...] = h[None].astype(out_ref.dtype)


def unet_block_forward(x_nchw, params):
    """UNetBlock forward (encoder=True, max_pool): returns (outputs, outputs)."""
    assert len(params) == 2, "fused kernel written for convs_per_block of len 2"
    N, C_in, H, W = x_nchw.shape
    HW = H * W
    (w1, _b1, g1, be1), (w2, _b2, g2, be2) = params
    C_mid = w1.shape[-1]
    C_out = w2.shape[-1]
    Cp_in, Cp_mid, Cp_out = _round_up8(C_in), _round_up8(C_mid), _round_up8(C_out)

    # NCHW -> (N, C, H*W): free trailing-dim collapse; then pad channels up to
    # the 8-sublane f32 tile so all in-kernel patch stores are full-tile.
    x = x_nchw.reshape(N, C_in, HW).astype(jnp.float32)
    if Cp_in != C_in:
        x = jnp.pad(x, ((0, 0), (0, Cp_in - C_in), (0, 0)))

    # HWIO (3,3,Ci,Co) -> (Cop, 9*Cip), zero-padded on both channel axes.
    # Column order (ky*3+kx)*Cip + ci matches the im2col patch-row order.
    # Conv biases are dropped: they cancel exactly under per-channel GroupNorm.
    def pack_w(w, cip, cop):
        kh, kw, ci, co = w.shape
        wp = jnp.zeros((kh, kw, cip, cop), jnp.float32)
        wp = wp.at[:, :, :ci, :co].set(w.astype(jnp.float32))
        return wp.reshape(kh * kw * cip, cop).T          # (cop, 9*cip)

    def pack_affine(v, cop):
        vp = jnp.zeros((cop,), jnp.float32).at[:v.shape[0]].set(v.astype(jnp.float32))
        return vp.reshape(cop, 1)

    w1m = pack_w(w1, Cp_in, Cp_mid)
    w2m = pack_w(w2, Cp_mid, Cp_out)
    g1c, be1c = pack_affine(g1, Cp_mid), pack_affine(be1, Cp_mid)
    g2c, be2c = pack_affine(g2, Cp_out), pack_affine(be2, Cp_out)

    # Boundary masks for the 8 off-center taps (1.0 = in-image tap), built once
    # and kept VMEM-resident via a constant index_map.
    p = jnp.arange(HW, dtype=jnp.int32)
    xi, yi = p % W, p // W
    masks = jnp.stack([
        ((xi + sx >= 0) & (xi + sx < W) & (yi + sy >= 0) & (yi + sy < H))
        for (sy, sx) in _OFF_CENTER
    ]).astype(jnp.float32)                               # (8, HW)

    kernel = functools.partial(_unet_block_kernel, W=W)

    out = pl.pallas_call(
        kernel,
        out_shape=jax.ShapeDtypeStruct((N, Cp_out, HW), jnp.float32),
        grid_spec=pltpu.PrefetchScalarGridSpec(
            num_scalar_prefetch=0,
            grid=(N,),
            in_specs=[
                pl.BlockSpec((1, Cp_in, HW), lambda n: (n, 0, 0)),
                # Masks / weights / affine params: constant block index ->
                # VMEM-resident across the batch grid (no re-DMA per step).
                pl.BlockSpec((8, HW), lambda n: (0, 0)),
                pl.BlockSpec((Cp_mid, 9 * Cp_in), lambda n: (0, 0)),
                pl.BlockSpec((Cp_mid, 1), lambda n: (0, 0)),
                pl.BlockSpec((Cp_mid, 1), lambda n: (0, 0)),
                pl.BlockSpec((Cp_out, 9 * Cp_mid), lambda n: (0, 0)),
                pl.BlockSpec((Cp_out, 1), lambda n: (0, 0)),
                pl.BlockSpec((Cp_out, 1), lambda n: (0, 0)),
            ],
            out_specs=pl.BlockSpec((1, Cp_out, HW), lambda n: (n, 0, 0)),
            scratch_shapes=[
                pltpu.VMEM((9 * Cp_in, HW), jnp.float32),    # im2col layer 1
                pltpu.VMEM((9 * Cp_mid, HW), jnp.float32),   # im2col layer 2
            ],
        ),
        compiler_params=pltpu.CompilerParams(
            dimension_semantics=("parallel",),   # batch axis -> both TCs on v7x
            vmem_limit_bytes=32 * 1024 * 1024),
    )(x, masks, w1m, g1c, be1c, w2m, g2c, be2c)

    out = out[:, :C_out, :].reshape(N, C_out, H, W)
    # encoder=True, downscale_method='max_pool' => (outputs, outputs)
    return out, out


def _init_params(key, in_channels, out_channels, convs_per_block):
    """Deterministic synthetic parameters for each ConvNormActBlock."""
    params = []
    c_in = in_channels
    for _ in convs_per_block:  # all '3x3_conv'
        c_out = out_channels
        key, kw, kb, kg, kbt = jax.random.split(key, 5)
        fan_in = 3 * 3 * c_in
        w = jax.random.normal(kw, (3, 3, c_in, c_out), jnp.float32) / jnp.sqrt(fan_in)
        b = 0.01 * jax.random.normal(kb, (c_out,), jnp.float32)
        gamma = 1.0 + 0.1 * jax.random.normal(kg, (c_out,), jnp.float32)
        beta = 0.05 * jax.random.normal(kbt, (c_out,), jnp.float32)
        params.append((w, b, gamma, beta))
        c_in = c_out
    return params


def _reference_forward(x_nchw, params):
    """Pure-JAX reference (lax conv + bias + GroupNorm + ReLU)."""
    x = x_nchw.astype(jnp.float32)
    for (w, b, gamma, beta) in params:
        w_oihw = jnp.transpose(w, (3, 2, 0, 1))
        y = lax.conv_general_dilated(
            x, w_oihw, window_strides=(1, 1), padding="SAME",
            dimension_numbers=("NCHW", "OIHW", "NCHW"))
        y = y + b[None, :, None, None]   # bias kept here (cancels under GN)
        mean = jnp.mean(y, axis=(2, 3), keepdims=True)
        var = jnp.mean((y - mean) ** 2, axis=(2, 3), keepdims=True)
        y = (y - mean) * lax.rsqrt(var + EPS)
        y = y * gamma[None, :, None, None] + beta[None, :, None, None]
        x = jnp.maximum(y, 0.0)
    return x, x


if __name__ == "__main__":
    # UNetBlock(in_channels=4, out_channels=8, encoder=True,
    #           convs_per_block=['3x3_conv', '3x3_conv'], bias=True,
    #           norm_layer='group', norm_kwargs={'num_groups': 'all'},
    #           act='relu', downscale_method='max_pool')
    N, C_in, H, W = 2, 4, 16, 16
    C_out = 8
    convs_per_block = ["3x3_conv", "3x3_conv"]

    key = jax.random.PRNGKey(0)
    key, kx = jax.random.split(key)
    x = jax.random.normal(kx, (N, C_in, H, W), jnp.float32)
    params = _init_params(key, C_in, C_out, convs_per_block)

    out, skip = jax.jit(unet_block_forward)(x, params)
    jax.block_until_ready(out)
    jax.block_until_ready(skip)

    ref_out, _ = _reference_forward(x, params)
    assert out.shape == (N, C_out, H, W)
    assert jnp.allclose(out, ref_out, atol=1e-4, rtol=1e-4), \
        float(jnp.max(jnp.abs(out - ref_out)))
    assert jnp.array_equal(out, skip)

    print("KERNEL_OK")
</pallas_src>

<mosaic_0001>
module attributes {stable_mosaic.version = 11 : i64} {
  func.func @_unet_block_kernel(%arg0: i32, %arg1: memref<1x8x256xf32, #tpu.memory_space<vmem>>, %arg2: memref<8x256xf32, #tpu.memory_space<vmem>>, %arg3: memref<8x72xf32, #tpu.memory_space<vmem>>, %arg4: memref<8x1xf32, #tpu.memory_space<vmem>>, %arg5: memref<8x1xf32, #tpu.memory_space<vmem>>, %arg6: memref<8x72xf32, #tpu.memory_space<vmem>>, %arg7: memref<8x1xf32, #tpu.memory_space<vmem>>, %arg8: memref<8x1xf32, #tpu.memory_space<vmem>>, %arg9: memref<1x8x256xf32, #tpu.memory_space<vmem>>, %arg10: memref<72x256xf32, #tpu.memory_space<vmem>>, %arg11: memref<72x256xf32, #tpu.memory_space<vmem>>) attributes {dimension_semantics = [#tpu.dimension_semantics<parallel>], iteration_bounds = array<i64: 2>, scalar_prefetch = 0 : i64, scratch_operands = 2 : i64, tpu.core_type = #tpu.core_type<tc>, window_params = [{transform_indices = @transform_0, window_bounds = array<i64: 1, 8, 256>}, {pipeline_mode = #tpu.pipeline_mode<synchronous>, transform_indices = @transform_1, window_bounds = array<i64: 8, 256>}, {pipeline_mode = #tpu.pipeline_mode<synchronous>, transform_indices = @transform_2, window_bounds = array<i64: 8, 72>}, {pipeline_mode = #tpu.pipeline_mode<synchronous>, transform_indices = @transform_3, window_bounds = array<i64: 8, 1>}, {pipeline_mode = #tpu.pipeline_mode<synchronous>, transform_indices = @transform_4, window_bounds = array<i64: 8, 1>}, {pipeline_mode = #tpu.pipeline_mode<synchronous>, transform_indices = @transform_5, window_bounds = array<i64: 8, 72>}, {pipeline_mode = #tpu.pipeline_mode<synchronous>, transform_indices = @transform_6, window_bounds = array<i64: 8, 1>}, {pipeline_mode = #tpu.pipeline_mode<synchronous>, transform_indices = @transform_7, window_bounds = array<i64: 8, 1>}, {transform_indices = @transform_8, window_bounds = array<i64: 1, 8, 256>}]} {
    %c0 = arith.constant 0 : index
    %c0_0 = arith.constant 0 : index
    %0 = vector.load %arg2[%c0, %c0_0] : memref<8x256xf32, #tpu.memory_space<vmem>>, vector<8x256xf32>
    %cst = arith.constant 0.000000e+00 : f32
    %1 = vector.broadcast %cst : f32 to vector<8x256xf32>
    %2 = arith.cmpf one, %0, %1 : vector<8x256xf32>
    %c0_1 = arith.constant 0 : index
    %c0_2 = arith.constant 0 : index
    %c0_3 = arith.constant 0 : index
    %3 = vector.load %arg1[%c0_1, %c0_2, %c0_3] : memref<1x8x256xf32, #tpu.memory_space<vmem>>, vector<1x8x256xf32>
    %4 = vector.shape_cast %3 : vector<1x8x256xf32> to vector<8x256xf32>
    %c17_i32 = arith.constant 17 : i32
    %5 = tpu.dynamic_rotate %4 by %c17_i32 dim 1 : vector<8x256xf32>, i32 -> vector<8x256xf32>
    %6 = vector.extract_strided_slice %2 {offsets = [0, 0], sizes = [1, 256], strides = [1, 1]} : vector<8x256xi1> to vector<1x256xi1>
    %cst_4 = arith.constant 0.000000e+00 : f32
    %7 = vector.shape_cast %6 : vector<1x256xi1> to vector<1x256xi1>
    %8 = vector.broadcast %7 : vector<1x256xi1> to vector<8x256xi1>
    %9 = vector.broadcast %cst_4 : f32 to vector<8x256xf32>
    %10 = arith.select %8, %5, %9 : vector<8x256xi1>, vector<8x256xf32>
    %c0_5 = arith.constant 0 : index
    %c0_6 = arith.constant 0 : index
    %11 = vector.load %arg10[%c0_5, %c0_6] : memref<72x256xf32, #tpu.memory_space<vmem>>, vector<8x256xf32>
    tpu.vector_store %arg10[%c0_5, %c0_6], %10 {strides = array<i32>} : memref<72x256xf32, #tpu.memory_space<vmem>>, vector<8x256xf32>,
    %c16_i32 = arith.constant 16 : i32
    %12 = tpu.dynamic_rotate %4 by %c16_i32 dim 1 : vector<8x256xf32>, i32 -> vector<8x256xf32>
    %13 = vector.extract_strided_slice %2 {offsets = [1, 0], sizes = [1, 256], strides = [1, 1]} : vector<8x256xi1> to vector<1x256xi1>
    %cst_7 = arith.constant 0.000000e+00 : f32
    %14 = vector.shape_cast %13 : vector<1x256xi1> to vector<1x256xi1>
    %15 = vector.broadcast %14 : vector<1x256xi1> to vector<8x256xi1>
    %16 = vector.broadcast %cst_7 : f32 to vector<8x256xf32>
    %17 = arith.select %15, %12, %16 : vector<8x256xi1>, vector<8x256xf32>
    %c8 = arith.constant 8 : index
    %c0_8 = arith.constant 0 : index
    %18 = vector.load %arg10[%c8, %c0_8] : memref<72x256xf32, #tpu.memory_space<vmem>>, vector<8x256xf32>
    tpu.vector_store %arg10[%c8, %c0_8], %17 {strides = array<i32>} : memref<72x256xf32, #tpu.memory_space<vmem>>, vector<8x256xf32>,
    %c15_i32 = arith.constant 15 : i32
    %19 = tpu.dynamic_rotate %4 by %c15_i32 dim 1 : vector<8x256xf32>, i32 -> vector<8x256xf32>
    %20 = vector.extract_strided_slice %2 {offsets = [2, 0], sizes = [1, 256], strides = [1, 1]} : vector<8x256xi1> to vector<1x256xi1>
    %cst_9 = arith.constant 0.000000e+00 : f32
    %21 = vector.shape_cast %20 : vector<1x256xi1> to vector<1x256xi1>
    %22 = vector.broadcast %21 : vector<1x256xi1> to vector<8x256xi1>
    %23 = vector.broadcast %cst_9 : f32 to vector<8x256xf32>
    %24 = arith.select %22, %19, %23 : vector<8x256xi1>, vector<8x256xf32>
    %c16 = arith.constant 16 : index
    %c0_10 = arith.constant 0 : index
    %25 = vector.load %arg10[%c16, %c0_10] : memref<72x256xf32, #tpu.memory_space<vmem>>, vector<8x256xf32>
    tpu.vector_store %arg10[%c16, %c0_10], %24 {strides = array<i32>} : memref<72x256xf32, #tpu.memory_space<vmem>>, vector<8x256xf32>,
    %c1_i32 = arith.constant 1 : i32
    %26 = tpu.dynamic_rotate %4 by %c1_i32 dim 1 : vector<8x256xf32>, i32 -> vector<8x256xf32>
    %27 = vector.extract_strided_slice %2 {offsets = [3, 0], sizes = [1, 256], strides = [1, 1]} : vector<8x256xi1> to vector<1x256xi1>
    %cst_11 = arith.constant 0.000000e+00 : f32
    %28 = vector.shape_cast %27 : vector<1x256xi1> to vector<1x256xi1>
    %29 = vector.broadcast %28 : vector<1x256xi1> to vector<8x256xi1>
    %30 = vector.broadcast %cst_11 : f32 to vector<8x256xf32>
    %31 = arith.select %29, %26, %30 : vector<8x256xi1>, vector<8x256xf32>
    %c24 = arith.constant 24 : index
    %c0_12 = arith.constant 0 : index
    %32 = vector.load %arg10[%c24, %c0_12] : memref<72x256xf32, #tpu.memory_space<vmem>>, vector<8x256xf32>
    tpu.vector_store %arg10[%c24, %c0_12], %31 {strides = array<i32>} : memref<72x256xf32, #tpu.memory_space<vmem>>, vector<8x256xf32>,
    %c32 = arith.constant 32 : index
    %c0_13 = arith.constant 0 : index
    %33 = vector.load %arg10[%c32, %c0_13] : memref<72x256xf32, #tpu.memory_space<vmem>>, vector<8x256xf32>
    tpu.vector_store %arg10[%c32, %c0_13], %4 {strides = array<i32>} : memref<72x256xf32, #tpu.memory_space<vmem>>, vector<8x256xf32>,
    %c255_i32 = arith.constant 255 : i32
    %34 = tpu.dynamic_rotate %4 by %c255_i32 dim 1 : vector<8x256xf32>, i32 -> vector<8x256xf32>
    %35 = vector.extract_strided_slice %2 {offsets = [4, 0], sizes = [1, 256], strides = [1, 1]} : vector<8x256xi1> to vector<1x256xi1>
    %cst_14 = arith.constant 0.000000e+00 : f32
    %36 = vector.shape_cast %35 : vector<1x256xi1> to vector<1x256xi1>
    %37 = vector.broadcast %36 : vector<1x256xi1> to vector<8x256xi1>
    %38 = vector.broadcast %cst_14 : f32 to vector<8x256xf32>
    %39 = arith.select %37, %34, %38 : vector<8x256xi1>, vector<8x256xf32>
    %c40 = arith.constant 40 : index
    %c0_15 = arith.constant 0 : index
    %40 = vector.load %arg10[%c40, %c0_15] : memref<72x256xf32, #tpu.memory_space<vmem>>, vector<8x256xf32>
    tpu.vector_store %arg10[%c40, %c0_15], %39 {strides = array<i32>} : memref<72x256xf32, #tpu.memory_space<vmem>>, vector<8x256xf32>,
    %c241_i32 = arith.constant 241 : i32
    %41 = tpu.dynamic_rotate %4 by %c241_i32 dim 1 : vector<8x256xf32>, i32 -> vector<8x256xf32>
    %42 = vector.extract_strided_slice %2 {offsets = [5, 0], sizes = [1, 256], strides = [1, 1]} : vector<8x256xi1> to vector<1x256xi1>
    %cst_16 = arith.constant 0.000000e+00 : f32
    %43 = vector.shape_cast %42 : vector<1x256xi1> to vector<1x256xi1>
    %44 = vector.broadcast %43 : vector<1x256xi1> to vector<8x256xi1>
    %45 = vector.broadcast %cst_16 : f32 to vector<8x256xf32>
    %46 = arith.select %44, %41, %45 : vector<8x256xi1>, vector<8x256xf32>
    %c48 = arith.constant 48 : index
    %c0_17 = arith.constant 0 : index
    %47 = vector.load %arg10[%c48, %c0_17] : memref<72x256xf32, #tpu.memory_space<vmem>>, vector<8x256xf32>
    tpu.vector_store %arg10[%c48, %c0_17], %46 {strides = array<i32>} : memref<72x256xf32, #tpu.memory_space<vmem>>, vector<8x256xf32>,
    %c240_i32 = arith.constant 240 : i32
    %48 = tpu.dynamic_rotate %4 by %c240_i32 dim 1 : vector<8x256xf32>, i32 -> vector<8x256xf32>
    %49 = vector.extract_strided_slice %2 {offsets = [6, 0], sizes = [1, 256], strides = [1, 1]} : vector<8x256xi1> to vector<1x256xi1>
    %cst_18 = arith.constant 0.000000e+00 : f32
    %50 = vector.shape_cast %49 : vector<1x256xi1> to vector<1x256xi1>
    %51 = vector.broadcast %50 : vector<1x256xi1> to vector<8x256xi1>
    %52 = vector.broadcast %cst_18 : f32 to vector<8x256xf32>
    %53 = arith.select %51, %48, %52 : vector<8x256xi1>, vector<8x256xf32>
    %c56 = arith.constant 56 : index
    %c0_19 = arith.constant 0 : index
    %54 = vector.load %arg10[%c56, %c0_19] : memref<72x256xf32, #tpu.memory_space<vmem>>, vector<8x256xf32>
    tpu.vector_store %arg10[%c56, %c0_19], %53 {strides = array<i32>} : memref<72x256xf32, #tpu.memory_space<vmem>>, vector<8x256xf32>,
    %c239_i32 = arith.constant 239 : i32
    %55 = tpu.dynamic_rotate %4 by %c239_i32 dim 1 : vector<8x256xf32>, i32 -> vector<8x256xf32>
    %56 = vector.extract_strided_slice %2 {offsets = [7, 0], sizes = [1, 256], strides = [1, 1]} : vector<8x256xi1> to vector<1x256xi1>
    %cst_20 = arith.constant 0.000000e+00 : f32
    %57 = vector.shape_cast %56 : vector<1x256xi1> to vector<1x256xi1>
    %58 = vector.broadcast %57 : vector<1x256xi1> to vector<8x256xi1>
    %59 = vector.broadcast %cst_20 : f32 to vector<8x256xf32>
    %60 = arith.select %58, %55, %59 : vector<8x256xi1>, vector<8x256xf32>
    %c64 = arith.constant 64 : index
    %c0_21 = arith.constant 0 : index
    %61 = vector.load %arg10[%c64, %c0_21] : memref<72x256xf32, #tpu.memory_space<vmem>>, vector<8x256xf32>
    tpu.vector_store %arg10[%c64, %c0_21], %60 {strides = array<i32>} : memref<72x256xf32, #tpu.memory_space<vmem>>, vector<8x256xf32>,
    %c0_22 = arith.constant 0 : index
    %c0_23 = arith.constant 0 : index
    %62 = vector.load %arg3[%c0_22, %c0_23] : memref<8x72xf32, #tpu.memory_space<vmem>>, vector<8x72xf32>
    %c0_24 = arith.constant 0 : index
    %c0_25 = arith.constant 0 : index
    %63 = vector.load %arg10[%c0_24, %c0_25] : memref<72x256xf32, #tpu.memory_space<vmem>>, vector<72x256xf32>
    %cst_26 = arith.constant dense<0.000000e+00> : vector<8x256xf32>
    %64 = tpu.matmul %62, %63, %cst_26 {dimension_numbers = #tpu.dot_dimension_numbers<[1], [0], [0], [1], [0, 0, 1, 1], [], []>} : vector<8x72xf32>, vector<72x256xf32>, vector<8x256xf32> -> vector<8x256xf32>
    %cst_27 = arith.constant dense<0.000000e+00> : vector<8xf32>
    %65 = vector.multi_reduction <add>, %64, %cst_27 [1] : vector<8x256xf32> to vector<8xf32>
    %66 = vector.shape_cast %65 : vector<8xf32> to vector<8x1xf32>
    %67 = arith.mulf %64, %64 : vector<8x256xf32>
    %cst_28 = arith.constant dense<0.000000e+00> : vector<8xf32>
    %68 = vector.multi_reduction <add>, %67, %cst_28 [1] : vector<8x256xf32> to vector<8xf32>
    %69 = vector.shape_cast %68 : vector<8xf32> to vector<8x1xf32>
    %cst_29 = arith.constant 3.906250e-03 : f32
    %70 = vector.broadcast %cst_29 : f32 to vector<8x1xf32>
    %71 = arith.mulf %66, %70 : vector<8x1xf32>
    %cst_30 = arith.constant 3.906250e-03 : f32
    %72 = vector.broadcast %cst_30 : f32 to vector<8x1xf32>
    %73 = arith.mulf %69, %72 : vector<8x1xf32>
    %74 = arith.mulf %71, %71 : vector<8x1xf32>
    %75 = arith.subf %73, %74 : vector<8x1xf32>
    %cst_31 = arith.constant 0.000000e+00 : f32
    %76 = vector.broadcast %cst_31 : f32 to vector<8x1xf32>
    %77 = arith.maximumf %75, %76 : vector<8x1xf32>
    %cst_32 = arith.constant 9.99999974E-6 : f32
    %78 = vector.broadcast %cst_32 : f32 to vector<8x1xf32>
    %79 = arith.addf %77, %78 : vector<8x1xf32>
    %80 = math.rsqrt %79 : vector<8x1xf32>
    %c0_33 = arith.constant 0 : index
    %c0_34 = arith.constant 0 : index
    %81 = vector.load %arg4[%c0_33, %c0_34] : memref<8x1xf32, #tpu.memory_space<vmem>>, vector<8x1xf32>
    %82 = arith.mulf %80, %81 : vector<8x1xf32>
    %c0_35 = arith.constant 0 : index
    %c0_36 = arith.constant 0 : index
    %83 = vector.load %arg5[%c0_35, %c0_36] : memref<8x1xf32, #tpu.memory_space<vmem>>, vector<8x1xf32>
    %84 = arith.mulf %71, %82 : vector<8x1xf32>
    %85 = arith.subf %83, %84 : vector<8x1xf32>
    %86 = vector.broadcast %82 : vector<8x1xf32> to vector<8x256xf32>
    %87 = arith.mulf %64, %86 : vector<8x256xf32>
    %88 = vector.broadcast %85 : vector<8x1xf32> to vector<8x256xf32>
    %89 = arith.addf %87, %88 : vector<8x256xf32>
    %cst_37 = arith.constant 0.000000e+00 : f32
    %90 = vector.broadcast %cst_37 : f32 to vector<8x256xf32>
    %91 = arith.maximumf %89, %90 : vector<8x256xf32>
    %c17_i32_38 = arith.constant 17 : i32
    %92 = tpu.dynamic_rotate %91 by %c17_i32_38 dim 1 : vector<8x256xf32>, i32 -> vector<8x256xf32>
    %93 = vector.extract_strided_slice %2 {offsets = [0, 0], sizes = [1, 256], strides = [1, 1]} : vector<8x256xi1> to vector<1x256xi1>
    %cst_39 = arith.constant 0.000000e+00 : f32
    %94 = vector.shape_cast %93 : vector<1x256xi1> to vector<1x256xi1>
    %95 = vector.broadcast %94 : vector<1x256xi1> to vector<8x256xi1>
    %96 = vector.broadcast %cst_39 : f32 to vector<8x256xf32>
    %97 = arith.select %95, %92, %96 : vector<8x256xi1>, vector<8x256xf32>
    %c0_40 = arith.constant 0 : index
    %c0_41 = arith.constant 0 : index
    %98 = vector.load %arg11[%c0_40, %c0_41] : memref<72x256xf32, #tpu.memory_space<vmem>>, vector<8x256xf32>
    tpu.vector_store %arg11[%c0_40, %c0_41], %97 {strides = array<i32>} : memref<72x256xf32, #tpu.memory_space<vmem>>, vector<8x256xf32>,
    %c16_i32_42 = arith.constant 16 : i32
    %99 = tpu.dynamic_rotate %91 by %c16_i32_42 dim 1 : vector<8x256xf32>, i32 -> vector<8x256xf32>
    %100 = vector.extract_strided_slice %2 {offsets = [1, 0], sizes = [1, 256], strides = [1, 1]} : vector<8x256xi1> to vector<1x256xi1>
    %cst_43 = arith.constant 0.000000e+00 : f32
    %101 = vector.shape_cast %100 : vector<1x256xi1> to vector<1x256xi1>
    %102 = vector.broadcast %101 : vector<1x256xi1> to vector<8x256xi1>
    %103 = vector.broadcast %cst_43 : f32 to vector<8x256xf32>
    %104 = arith.select %102, %99, %103 : vector<8x256xi1>, vector<8x256xf32>
    %c8_44 = arith.constant 8 : index
    %c0_45 = arith.constant 0 : index
    %105 = vector.load %arg11[%c8_44, %c0_45] : memref<72x256xf32, #tpu.memory_space<vmem>>, vector<8x256xf32>
    tpu.vector_store %arg11[%c8_44, %c0_45], %104 {strides = array<i32>} : memref<72x256xf32, #tpu.memory_space<vmem>>, vector<8x256xf32>,
    %c15_i32_46 = arith.constant 15 : i32
    %106 = tpu.dynamic_rotate %91 by %c15_i32_46 dim 1 : vector<8x256xf32>, i32 -> vector<8x256xf32>
    %107 = vector.extract_strided_slice %2 {offsets = [2, 0], sizes = [1, 256], strides = [1, 1]} : vector<8x256xi1> to vector<1x256xi1>
    %cst_47 = arith.constant 0.000000e+00 : f32
    %108 = vector.shape_cast %107 : vector<1x256xi1> to vector<1x256xi1>
    %109 = vector.broadcast %108 : vector<1x256xi1> to vector<8x256xi1>
    %110 = vector.broadcast %cst_47 : f32 to vector<8x256xf32>
    %111 = arith.select %109, %106, %110 : vector<8x256xi1>, vector<8x256xf32>
    %c16_48 = arith.constant 16 : index
    %c0_49 = arith.constant 0 : index
    %112 = vector.load %arg11[%c16_48, %c0_49] : memref<72x256xf32, #tpu.memory_space<vmem>>, vector<8x256xf32>
    tpu.vector_store %arg11[%c16_48, %c0_49], %111 {strides = array<i32>} : memref<72x256xf32, #tpu.memory_space<vmem>>, vector<8x256xf32>,
    %c1_i32_50 = arith.constant 1 : i32
    %113 = tpu.dynamic_rotate %91 by %c1_i32_50 dim 1 : vector<8x256xf32>, i32 -> vector<8x256xf32>
    %114 = vector.extract_strided_slice %2 {offsets = [3, 0], sizes = [1, 256], strides = [1, 1]} : vector<8x256xi1> to vector<1x256xi1>
    %cst_51 = arith.constant 0.000000e+00 : f32
    %115 = vector.shape_cast %114 : vector<1x256xi1> to vector<1x256xi1>
    %116 = vector.broadcast %115 : vector<1x256xi1> to vector<8x256xi1>
    %117 = vector.broadcast %cst_51 : f32 to vector<8x256xf32>
    %118 = arith.select %116, %113, %117 : vector<8x256xi1>, vector<8x256xf32>
    %c24_52 = arith.constant 24 : index
    %c0_53 = arith.constant 0 : index
    %119 = vector.load %arg11[%c24_52, %c0_53] : memref<72x256xf32, #tpu.memory_space<vmem>>, vector<8x256xf32>
    tpu.vector_store %arg11[%c24_52, %c0_53], %118 {strides = array<i32>} : memref<72x256xf32, #tpu.memory_space<vmem>>, vector<8x256xf32>,
    %c32_54 = arith.constant 32 : index
    %c0_55 = arith.constant 0 : index
    %120 = vector.load %arg11[%c32_54, %c0_55] : memref<72x256xf32, #tpu.memory_space<vmem>>, vector<8x256xf32>
    tpu.vector_store %arg11[%c32_54, %c0_55], %91 {strides = array<i32>} : memref<72x256xf32, #tpu.memory_space<vmem>>, vector<8x256xf32>,
    %c255_i32_56 = arith.constant 255 : i32
    %121 = tpu.dynamic_rotate %91 by %c255_i32_56 dim 1 : vector<8x256xf32>, i32 -> vector<8x256xf32>
    %122 = vector.extract_strided_slice %2 {offsets = [4, 0], sizes = [1, 256], strides = [1, 1]} : vector<8x256xi1> to vector<1x256xi1>
    %cst_57 = arith.constant 0.000000e+00 : f32
    %123 = vector.shape_cast %122 : vector<1x256xi1> to vector<1x256xi1>
    %124 = vector.broadcast %123 : vector<1x256xi1> to vector<8x256xi1>
    %125 = vector.broadcast %cst_57 : f32 to vector<8x256xf32>
    %126 = arith.select %124, %121, %125 : vector<8x256xi1>, vector<8x256xf32>
    %c40_58 = arith.constant 40 : index
    %c0_59 = arith.constant 0 : index
    %127 = vector.load %arg11[%c40_58, %c0_59] : memref<72x256xf32, #tpu.memory_space<vmem>>, vector<8x256xf32>
    tpu.vector_store %arg11[%c40_58, %c0_59], %126 {strides = array<i32>} : memref<72x256xf32, #tpu.memory_space<vmem>>, vector<8x256xf32>,
    %c241_i32_60 = arith.constant 241 : i32
    %128 = tpu.dynamic_rotate %91 by %c241_i32_60 dim 1 : vector<8x256xf32>, i32 -> vector<8x256xf32>
    %129 = vector.extract_strided_slice %2 {offsets = [5, 0], sizes = [1, 256], strides = [1, 1]} : vector<8x256xi1> to vector<1x256xi1>
    %cst_61 = arith.constant 0.000000e+00 : f32
    %130 = vector.shape_cast %129 : vector<1x256xi1> to vector<1x256xi1>
    %131 = vector.broadcast %130 : vector<1x256xi1> to vector<8x256xi1>
    %132 = vector.broadcast %cst_61 : f32 to vector<8x256xf32>
    %133 = arith.select %131, %128, %132 : vector<8x256xi1>, vector<8x256xf32>
    %c48_62 = arith.constant 48 : index
    %c0_63 = arith.constant 0 : index
    %134 = vector.load %arg11[%c48_62, %c0_63] : memref<72x256xf32, #tpu.memory_space<vmem>>, vector<8x256xf32>
    tpu.vector_store %arg11[%c48_62, %c0_63], %133 {strides = array<i32>} : memref<72x256xf32, #tpu.memory_space<vmem>>, vector<8x256xf32>,
    %c240_i32_64 = arith.constant 240 : i32
    %135 = tpu.dynamic_rotate %91 by %c240_i32_64 dim 1 : vector<8x256xf32>, i32 -> vector<8x256xf32>
    %136 = vector.extract_strided_slice %2 {offsets = [6, 0], sizes = [1, 256], strides = [1, 1]} : vector<8x256xi1> to vector<1x256xi1>
    %cst_65 = arith.constant 0.000000e+00 : f32
    %137 = vector.shape_cast %136 : vector<1x256xi1> to vector<1x256xi1>
    %138 = vector.broadcast %137 : vector<1x256xi1> to vector<8x256xi1>
    %139 = vector.broadcast %cst_65 : f32 to vector<8x256xf32>
    %140 = arith.select %138, %135, %139 : vector<8x256xi1>, vector<8x256xf32>
    %c56_66 = arith.constant 56 : index
    %c0_67 = arith.constant 0 : index
    %141 = vector.load %arg11[%c56_66, %c0_67] : memref<72x256xf32, #tpu.memory_space<vmem>>, vector<8x256xf32>
    tpu.vector_store %arg11[%c56_66, %c0_67], %140 {strides = array<i32>} : memref<72x256xf32, #tpu.memory_space<vmem>>, vector<8x256xf32>,
    %c239_i32_68 = arith.constant 239 : i32
    %142 = tpu.dynamic_rotate %91 by %c239_i32_68 dim 1 : vector<8x256xf32>, i32 -> vector<8x256xf32>
    %143 = vector.extract_strided_slice %2 {offsets = [7, 0], sizes = [1, 256], strides = [1, 1]} : vector<8x256xi1> to vector<1x256xi1>
    %cst_69 = arith.constant 0.000000e+00 : f32
    %144 = vector.shape_cast %143 : vector<1x256xi1> to vector<1x256xi1>
    %145 = vector.broadcast %144 : vector<1x256xi1> to vector<8x256xi1>
    %146 = vector.broadcast %cst_69 : f32 to vector<8x256xf32>
    %147 = arith.select %145, %142, %146 : vector<8x256xi1>, vector<8x256xf32>
    %c64_70 = arith.constant 64 : index
    %c0_71 = arith.constant 0 : index
    %148 = vector.load %arg11[%c64_70, %c0_71] : memref<72x256xf32, #tpu.memory_space<vmem>>, vector<8x256xf32>
    tpu.vector_store %arg11[%c64_70, %c0_71], %147 {strides = array<i32>} : memref<72x256xf32, #tpu.memory_space<vmem>>, vector<8x256xf32>,
    %c0_72 = arith.constant 0 : index
    %c0_73 = arith.constant 0 : index
    %149 = vector.load %arg6[%c0_72, %c0_73] : memref<8x72xf32, #tpu.memory_space<vmem>>, vector<8x72xf32>
    %c0_74 = arith.constant 0 : index
    %c0_75 = arith.constant 0 : index
    %150 = vector.load %arg11[%c0_74, %c0_75] : memref<72x256xf32, #tpu.memory_space<vmem>>, vector<72x256xf32>
    %cst_76 = arith.constant dense<0.000000e+00> : vector<8x256xf32>
    %151 = tpu.matmul %149, %150, %cst_76 {dimension_numbers = #tpu.dot_dimension_numbers<[1], [0], [0], [1], [0, 0, 1, 1], [], []>} : vector<8x72xf32>, vector<72x256xf32>, vector<8x256xf32> -> vector<8x256xf32>
    %cst_77 = arith.constant dense<0.000000e+00> : vector<8xf32>
    %152 = vector.multi_reduction <add>, %151, %cst_77 [1] : vector<8x256xf32> to vector<8xf32>
    %153 = vector.shape_cast %152 : vector<8xf32> to vector<8x1xf32>
    %154 = arith.mulf %151, %151 : vector<8x256xf32>
    %cst_78 = arith.constant dense<0.000000e+00> : vector<8xf32>
    %155 = vector.multi_reduction <add>, %154, %cst_78 [1] : vector<8x256xf32> to vector<8xf32>
    %156 = vector.shape_cast %155 : vector<8xf32> to vector<8x1xf32>
    %cst_79 = arith.constant 3.906250e-03 : f32
    %157 = vector.broadcast %cst_79 : f32 to vector<8x1xf32>
    %158 = arith.mulf %153, %157 : vector<8x1xf32>
    %cst_80 = arith.constant 3.906250e-03 : f32
    %159 = vector.broadcast %cst_80 : f32 to vector<8x1xf32>
    %160 = arith.mulf %156, %159 : vector<8x1xf32>
    %161 = arith.mulf %158, %158 : vector<8x1xf32>
    %162 = arith.subf %160, %161 : vector<8x1xf32>
    %cst_81 = arith.constant 0.000000e+00 : f32
    %163 = vector.broadcast %cst_81 : f32 to vector<8x1xf32>
    %164 = arith.maximumf %162, %163 : vector<8x1xf32>
    %cst_82 = arith.constant 9.99999974E-6 : f32
    %165 = vector.broadcast %cst_82 : f32 to vector<8x1xf32>
    %166 = arith.addf %164, %165 : vector<8x1xf32>
    %167 = math.rsqrt %166 : vector<8x1xf32>
    %c0_83 = arith.constant 0 : index
    %c0_84 = arith.constant 0 : index
    %168 = vector.load %arg7[%c0_83, %c0_84] : memref<8x1xf32, #tpu.memory_space<vmem>>, vector<8x1xf32>
    %169 = arith.mulf %167, %168 : vector<8x1xf32>
    %c0_85 = arith.constant 0 : index
    %c0_86 = arith.constant 0 : index
    %170 = vector.load %arg8[%c0_85, %c0_86] : memref<8x1xf32, #tpu.memory_space<vmem>>, vector<8x1xf32>
    %171 = arith.mulf %158, %169 : vector<8x1xf32>
    %172 = arith.subf %170, %171 : vector<8x1xf32>
    %173 = vector.broadcast %169 : vector<8x1xf32> to vector<8x256xf32>
    %174 = arith.mulf %151, %173 : vector<8x256xf32>
    %175 = vector.broadcast %172 : vector<8x1xf32> to vector<8x256xf32>
    %176 = arith.addf %174, %175 : vector<8x256xf32>
    %cst_87 = arith.constant 0.000000e+00 : f32
    %177 = vector.broadcast %cst_87 : f32 to vector<8x256xf32>
    %178 = arith.maximumf %176, %177 : vector<8x256xf32>
    %179 = vector.shape_cast %178 : vector<8x256xf32> to vector<1x8x256xf32>
    %c0_88 = arith.constant 0 : index
    %c0_89 = arith.constant 0 : index
    %c0_90 = arith.constant 0 : index
    %180 = vector.load %arg9[%c0_88, %c0_89, %c0_90] : memref<1x8x256xf32, #tpu.memory_space<vmem>>, vector<1x8x256xf32>
    tpu.vector_store %arg9[%c0_88, %c0_89, %c0_90], %179 {strides = array<i32>} : memref<1x8x256xf32, #tpu.memory_space<vmem>>, vector<1x8x256xf32>,
    return
  }
  func.func @transform_0(%arg0: i32) -> (i32, i32, i32) {
    %c0_i32 = arith.constant 0 : i32
    %c0_i32_0 = arith.constant 0 : i32
    %c0_i32_1 = arith.constant 0 : i32
    return %arg0, %c0_i32, %c0_i32_0 : i32, i32, i32
  }
  func.func @transform_1(%arg0: i32) -> (i32, i32) {
    %c0_i32 = arith.constant 0 : i32
    %c0_i32_0 = arith.constant 0 : i32
    %c0_i32_1 = arith.constant 0 : i32
    return %c0_i32, %c0_i32_0 : i32, i32
  }
  func.func @transform_2(%arg0: i32) -> (i32, i32) {
    %c0_i32 = arith.constant 0 : i32
    %c0_i32_0 = arith.constant 0 : i32
    %c0_i32_1 = arith.constant 0 : i32
    return %c0_i32, %c0_i32_0 : i32, i32
  }
  func.func @transform_3(%arg0: i32) -> (i32, i32) {
    %c0_i32 = arith.constant 0 : i32
    %c0_i32_0 = arith.constant 0 : i32
    %c0_i32_1 = arith.constant 0 : i32
    return %c0_i32, %c0_i32_0 : i32, i32
  }
  func.func @transform_4(%arg0: i32) -> (i32, i32) {
    %c0_i32 = arith.constant 0 : i32
    %c0_i32_0 = arith.constant 0 : i32
    %c0_i32_1 = arith.constant 0 : i32
    return %c0_i32, %c0_i32_0 : i32, i32
  }
  func.func @transform_5(%arg0: i32) -> (i32, i32) {
    %c0_i32 = arith.constant 0 : i32
    %c0_i32_0 = arith.constant 0 : i32
    %c0_i32_1 = arith.constant 0 : i32
    return %c0_i32, %c0_i32_0 : i32, i32
  }
  func.func @transform_6(%arg0: i32) -> (i32, i32) {
    %c0_i32 = arith.constant 0 : i32
    %c0_i32_0 = arith.constant 0 : i32
    %c0_i32_1 = arith.constant 0 : i32
    return %c0_i32, %c0_i32_0 : i32, i32
  }
  func.func @transform_7(%arg0: i32) -> (i32, i32) {
    %c0_i32 = arith.constant 0 : i32
    %c0_i32_0 = arith.constant 0 : i32
    %c0_i32_1 = arith.constant 0 : i32
    return %c0_i32, %c0_i32_0 : i32, i32
  }
  func.func @transform_8(%arg0: i32) -> (i32, i32, i32) {
    %c0_i32 = arith.constant 0 : i32
    %c0_i32_0 = arith.constant 0 : i32
    %c0_i32_1 = arith.constant 0 : i32
    return %arg0, %c0_i32, %c0_i32_0 : i32, i32, i32
  }
}

</mosaic_0001>

<llo_original>
// kernel: unet_block_forward.1
$region0: #{unet_block_forward.1}
  #allocation0 [shape = 'u32[]', space=smem, size = 0x4, offset = 0x4, fixed_abs, tag = 'smem constant byte address 0x4 - core index']
  #allocation1 [shape = 'u32[72,128]{1,0:T(1,128)}', space=vmem, size = 0x9000, scoped, tag = 'internal scratch']
  #allocation2 [shape = 'f32[72,256]{1,0:T(8,128)}', space=vmem, size = 0x12000, scoped, tag = 'scratch operand']
  #allocation3 [shape = 'f32[72,256]{1,0:T(8,128)}', space=vmem, size = 0x12000, scoped, tag = 'scratch operand']
  %s0 = inlined_call_operand.vmem [shape: f32[2,8,256], index: 0, kind: input, shape index: {}]
  %s1 = inlined_call_operand.vmem [shape: f32[8,256], index: 1, kind: input, shape index: {}]
  %s2 = inlined_call_operand.vmem [shape: f32[8,72], index: 2, kind: input, shape index: {}]
  %s3 = inlined_call_operand.vmem [shape: f32[8,1], index: 3, kind: input, shape index: {}]
  %s4 = inlined_call_operand.vmem [shape: f32[8,1], index: 4, kind: input, shape index: {}]
  %s5 = inlined_call_operand.vmem [shape: f32[8,72], index: 5, kind: input, shape index: {}]
  %s6 = inlined_call_operand.vmem [shape: f32[8,1], index: 6, kind: input, shape index: {}]
  %s7 = inlined_call_operand.vmem [shape: f32[8,1], index: 7, kind: input, shape index: {}]
  %s8 = inlined_call_operand.vmem [shape: f32[2,8,256], index: 8, kind: output, shape index: {}]
  %s9 = sld [smem:[#allocation0]]
  $region65: #{unet_block_forward.1} parent=0
    _
  %s11 = ssub.s32 1, %s9
  %s12 = scalar_select 0, %s11, %s9
  loop: start=0, step=1, limit=4
  $region2: #{unet_block_forward.1} parent=0 // loop_pre_header
    _
  $region3: #{unet_block_forward.1} parent=0 // loop_header
    %s14 = sphi 0, %s18
    %p15 = scmp.ge.s32.totalorder %s14, 4
    %s24 = sphi 0, %s26
    %s27 = sphi 0, %s24
    %s28 = sphi 0, %s27
    %s44 = sphi 0, %s28
    %s48 = sphi 0, %s48
    %s50 = sphi 0, %s48
    %s51 = sphi 0, %s50
    %s65 = sphi 0, %s51
    %s69 = sphi 0, %s69
    %s71 = sphi 0, %s69
    %s72 = sphi 0, %s71
    %s86 = sphi 0, %s72
    %s90 = sphi 0, %s90
    %s92 = sphi 0, %s90
    %s93 = sphi 0, %s92
    %s107 = sphi 0, %s93
    %s111 = sphi 0, %s111
    %s113 = sphi 0, %s111
    %s114 = sphi 0, %s113
    %s128 = sphi 0, %s114
    %s132 = sphi 0, %s132
    %s134 = sphi 0, %s132
    %s135 = sphi 0, %s134
    %s149 = sphi 0, %s135
    %s153 = sphi 0, %s153
    %s155 = sphi 0, %s153
    %s156 = sphi 0, %s155
    %s170 = sphi 0, %s156
    %s174 = sphi 0, %s174
    %s176 = sphi 0, %s174
    %s177 = sphi 0, %s176
    %s191 = sphi 0, %s177
    %s197 = sphi 0, %s199
    %s200 = sphi 0, %s197
    %s201 = sphi 0, %s200
    %s217 = sphi 0, %s201
  $region4: #{unet_block_forward.1} parent=0 // loop_header_branch
    %17 = sbr.rel (%p15) target = $region8
  $region5: #{unet_block_forward.1} parent=0 // loop_body
    %s19 = ssub.s32 %s14, 1
    %s20 = ssub.s32 %s14, 2
    %s21 = sadd.s32 %s14, 1
    %s22 = ssub.s32 %s14, %s21
    %p23 = scmp.eq.s32.totalorder %s22, 0
    %s25 = sadd.s32 %s24, 1
    %s26 = scalar_select %p23, %s24, %s25
    %p29 = pneg %p23
    %p30 = scmp.eq.s32.totalorder %s14, 1
    %p31 = por %p29, %p30
    %p32 = scmp.ne.s32.totalorder %s24, %s27
    %p33 = scmp.eq.s32.totalorder %s14, 0
    %p34 = por %p32, %p33
    %p35 = scmp.ne.s32.totalorder %s24, %s27
    %p36 = scmp.eq.s32.totalorder %s19, 1
    %p37 = por %p35, %p36
    %p38 = scmp.ne.s32.totalorder %s27, %s28
    %p39 = scmp.eq.s32.totalorder %s19, 0
    %p40 = por %p38, %p39
    %p41 = scmp.ne.s32.totalorder %s27, %s28
    %p42 = scmp.eq.s32.totalorder %s20, 1
    %p43 = por %p41, %p42
    %p45 = scmp.ne.s32.totalorder %s28, %s44
    %p46 = scmp.eq.s32.totalorder %s20, 0
    %p47 = por %p45, %p46
    %s49 = sadd.s32 %s48, 1
    %p52 = scmp.eq.s32.totalorder %s14, 1
    %p53 = scmp.ne.s32.totalorder %s48, %s50
    %p54 = scmp.eq.s32.totalorder %s14, 0
    %p55 = por %p53, %p54
    %p56 = scmp.ne.s32.totalorder %s48, %s50
    %p57 = scmp.eq.s32.totalorder %s19, 1
    %p58 = por %p56, %p57
    %p59 = scmp.ne.s32.totalorder %s50, %s51
    %p60 = scmp.eq.s32.totalorder %s19, 0
    %p61 = por %p59, %p60
    %p62 = scmp.ne.s32.totalorder %s50, %s51
    %p63 = scmp.eq.s32.totalorder %s20, 1
    %p64 = por %p62, %p63
    %p66 = scmp.ne.s32.totalorder %s51, %s65
    %p67 = scmp.eq.s32.totalorder %s20, 0
    %p68 = por %p66, %p67
    %s70 = sadd.s32 %s69, 1
    %p73 = scmp.eq.s32.totalorder %s14, 1
    %p74 = scmp.ne.s32.totalorder %s69, %s71
    %p75 = scmp.eq.s32.totalorder %s14, 0
    %p76 = por %p74, %p75
    %p77 = scmp.ne.s32.totalorder %s69, %s71
    %p78 = scmp.eq.s32.totalorder %s19, 1
    %p79 = por %p77, %p78
    %p80 = scmp.ne.s32.totalorder %s71, %s72
    %p81 = scmp.eq.s32.totalorder %s19, 0
    %p82 = por %p80, %p81
    %p83 = scmp.ne.s32.totalorder %s71, %s72
    %p84 = scmp.eq.s32.totalorder %s20, 1
    %p85 = por %p83, %p84
    %p87 = scmp.ne.s32.totalorder %s72, %s86
    %p88 = scmp.eq.s32.totalorder %s20, 0
    %p89 = por %p87, %p88
    %s91 = sadd.s32 %s90, 1
    %p94 = scmp.eq.s32.totalorder %s14, 1
    %p95 = scmp.ne.s32.totalorder %s90, %s92
    %p96 = scmp.eq.s32.totalorder %s14, 0
    %p97 = por %p95, %p96
    %p98 = scmp.ne.s32.totalorder %s90, %s92
    %p99 = scmp.eq.s32.totalorder %s19, 1
    %p100 = por %p98, %p99
    %p101 = scmp.ne.s32.totalorder %s92, %s93
    %p102 = scmp.eq.s32.totalorder %s19, 0
    %p103 = por %p101, %p102
    %p104 = scmp.ne.s32.totalorder %s92, %s93
    %p105 = scmp.eq.s32.totalorder %s20, 1
    %p106 = por %p104, %p105
    %p108 = scmp.ne.s32.totalorder %s93, %s107
    %p109 = scmp.eq.s32.totalorder %s20, 0
    %p110 = por %p108, %p109
    %s112 = sadd.s32 %s111, 1
    %p115 = scmp.eq.s32.totalorder %s14, 1
    %p116 = scmp.ne.s32.totalorder %s111, %s113
    %p117 = scmp.eq.s32.totalorder %s14, 0
    %p118 = por %p116, %p117
    %p119 = scmp.ne.s32.totalorder %s111, %s113
    %p120 = scmp.eq.s32.totalorder %s19, 1
    %p121 = por %p119, %p120
    %p122 = scmp.ne.s32.totalorder %s113, %s114
    %p123 = scmp.eq.s32.totalorder %s19, 0
    %p124 = por %p122, %p123
    %p125 = scmp.ne.s32.totalorder %s113, %s114
    %p126 = scmp.eq.s32.totalorder %s20, 1
    %p127 = por %p125, %p126
    %p129 = scmp.ne.s32.totalorder %s114, %s128
    %p130 = scmp.eq.s32.totalorder %s20, 0
    %p131 = por %p129, %p130
    %s133 = sadd.s32 %s132, 1
    %p136 = scmp.eq.s32.totalorder %s14, 1
    %p137 = scmp.ne.s32.totalorder %s132, %s134
    %p138 = scmp.eq.s32.totalorder %s14, 0
    %p139 = por %p137, %p138
    %p140 = scmp.ne.s32.totalorder %s132, %s134
    %p141 = scmp.eq.s32.totalorder %s19, 1
    %p142 = por %p140, %p141
    %p143 = scmp.ne.s32.totalorder %s134, %s135
    %p144 = scmp.eq.s32.totalorder %s19, 0
    %p145 = por %p143, %p144
    %p146 = scmp.ne.s32.totalorder %s134, %s135
    %p147 = scmp.eq.s32.totalorder %s20, 1
    %p148 = por %p146, %p147
    %p150 = scmp.ne.s32.totalorder %s135, %s149
    %p151 = scmp.eq.s32.totalorder %s20, 0
    %p152 = por %p150, %p151
    %s154 = sadd.s32 %s153, 1
    %p157 = scmp.eq.s32.totalorder %s14, 1
    %p158 = scmp.ne.s32.totalorder %s153, %s155
    %p159 = scmp.eq.s32.totalorder %s14, 0
    %p160 = por %p158, %p159
    %p161 = scmp.ne.s32.totalorder %s153, %s155
    %p162 = scmp.eq.s32.totalorder %s19, 1
    %p163 = por %p161, %p162
    %p164 = scmp.ne.s32.totalorder %s155, %s156
    %p165 = scmp.eq.s32.totalorder %s19, 0
    %p166 = por %p164, %p165
    %p167 = scmp.ne.s32.totalorder %s155, %s156
    %p168 = scmp.eq.s32.totalorder %s20, 1
    %p169 = por %p167, %p168
    %p171 = scmp.ne.s32.totalorder %s156, %s170
    %p172 = scmp.eq.s32.totalorder %s20, 0
    %p173 = por %p171, %p172
    %s175 = sadd.s32 %s174, 1
    %p178 = scmp.eq.s32.totalorder %s14, 1
    %p179 = scmp.ne.s32.totalorder %s174, %s176
    %p180 = scmp.eq.s32.totalorder %s14, 0
    %p181 = por %p179, %p180
    %p182 = scmp.ne.s32.totalorder %s174, %s176
    %p183 = scmp.eq.s32.totalorder %s19, 1
    %p184 = por %p182, %p183
    %p185 = scmp.ne.s32.totalorder %s176, %s177
    %p186 = scmp.eq.s32.totalorder %s19, 0
    %p187 = por %p185, %p186
    %p188 = scmp.ne.s32.totalorder %s176, %s177
    %p189 = scmp.eq.s32.totalorder %s20, 1
    %p190 = por %p188, %p189
    %p192 = scmp.ne.s32.totalorder %s177, %s191
    %p193 = scmp.eq.s32.totalorder %s20, 0
    %p194 = por %p192, %p193
    %s195 = ssub.s32 %s14, %s21
    %p196 = scmp.eq.s32.totalorder %s195, 0
    %s198 = sadd.s32 %s197, 1
    %s199 = scalar_select %p196, %s197, %s198
    %p202 = pneg %p196
    %p203 = scmp.eq.s32.totalorder %s14, 1
    %p204 = por %p202, %p203
    %p205 = scmp.ne.s32.totalorder %s197, %s200
    %p206 = scmp.eq.s32.totalorder %s14, 0
    %p207 = por %p205, %p206
    %p208 = scmp.ne.s32.totalorder %s197, %s200
    %p209 = scmp.eq.s32.totalorder %s19, 1
    %p210 = por %p208, %p209
    %p211 = scmp.ne.s32.totalorder %s200, %s201
    %p212 = scmp.eq.s32.totalorder %s19, 0
    %p213 = por %p211, %p212
    %p214 = scmp.ne.s32.totalorder %s200, %s201
    %p215 = scmp.eq.s32.totalorder %s20, 1
    %p216 = por %p214, %p215
    %p218 = scmp.ne.s32.totalorder %s201, %s217
    %p219 = scmp.eq.s32.totalorder %s20, 0
    %p220 = por %p218, %p219
    %p221 = scmp.le.s32.totalorder 1, %s14
    %p222 = scmp.lt.s32.totalorder %s14, 3
    %p223 = pnand %p221, %p222
    %p224 = pneg %p223
    // Predicated region
    $region9: #{unet_block_forward.1} parent=5 // pred_check
      _
    $region10: #{unet_block_forward.1} parent=5 // pred_check_branch
      %226 = sbr.rel (%p223) target = $region12
    $region11: #{unet_block_forward.1} parent=5 // pred_region
      %s227 = ssub.s32 %s14, 1
      // Predicated region
      $region13: #{unet_block_forward.1} parent=11 // pred_check
        %p228 = pneg %p61
      $region14: #{unet_block_forward.1} parent=11 // pred_check_branch
        %230 = sbr.rel (%p228) target = $region16
      $region15: #{unet_block_forward.1} parent=11 // pred_region
        _
      $region16: #{unet_block_forward.1} parent=11 // pred_fallthru
        _
      // Predicated region
      $region17: #{unet_block_forward.1} parent=11 // pred_check
        %p231 = pneg %p82
      $region18: #{unet_block_forward.1} parent=11 // pred_check_branch
        %233 = sbr.rel (%p231) target = $region20
      $region19: #{unet_block_forward.1} parent=11 // pred_region
        _
      $region20: #{unet_block_forward.1} parent=11 // pred_fallthru
        _
      // Predicated region
      $region21: #{unet_block_forward.1} parent=11 // pred_check
        %p234 = pneg %p103
      $region22: #{unet_block_forward.1} parent=11 // pred_check_branch
        %236 = sbr.rel (%p234) target = $region24
      $region23: #{unet_block_forward.1} parent=11 // pred_region
        _
      $region24: #{unet_block_forward.1} parent=11 // pred_fallthru
        _
      // Predicated region
      $region25: #{unet_block_forward.1} parent=11 // pred_check
        %p237 = pneg %p124
      $region26: #{unet_block_forward.1} parent=11 // pred_check_branch
        %239 = sbr.rel (%p237) target = $region28
      $region27: #{unet_block_forward.1} parent=11 // pred_region
        _
      $region28: #{unet_block_forward.1} parent=11 // pred_fallthru
        _
      // Predicated region
      $region29: #{unet_block_forward.1} parent=11 // pred_check
        %p240 = pneg %p145
      $region30: #{unet_block_forward.1} parent=11 // pred_check_branch
        %242 = sbr.rel (%p240) target = $region32
      $region31: #{unet_block_forward.1} parent=11 // pred_region
        _
      $region32: #{unet_block_forward.1} parent=11 // pred_fallthru
        _
      // Predicated region
      $region33: #{unet_block_forward.1} parent=11 // pred_check
        %p243 = pneg %p166
      $region34: #{unet_block_forward.1} parent=11 // pred_check_branch
        %245 = sbr.rel (%p243) target = $region36
      $region35: #{unet_block_forward.1} parent=11 // pred_region
        _
      $region36: #{unet_block_forward.1} parent=11 // pred_fallthru
        _
      // Predicated region
      $region37: #{unet_block_forward.1} parent=11 // pred_check
        %p246 = pneg %p187
      $region38: #{unet_block_forward.1} parent=11 // pred_check_branch
        %248 = sbr.rel (%p246) target = $region40
      $region39: #{unet_block_forward.1} parent=11 // pred_region
        _
      $region40: #{unet_block_forward.1} parent=11 // pred_fallthru
        _
    $region12: #{unet_block_forward.1} parent=5 // pred_fallthru
      _
    %p249 = scmp.lt.s32.totalorder %s14, 2
    // Predicated region
    $region41: #{unet_block_forward.1} parent=5 // pred_check
      %p250 = pneg %p249
    $region42: #{unet_block_forward.1} parent=5 // pred_check_branch
      %252 = sbr.rel (%p250) target = $region44
    $region43: #{unet_block_forward.1} parent=5 // pred_region
      // Predicated region
      $region45: #{unet_block_forward.1} parent=43 // pred_check
        %p253 = pneg %p34
      $region46: #{unet_block_forward.1} parent=43 // pred_check_branch
        %255 = sbr.rel (%p253) target = $region48
      $region47: #{unet_block_forward.1} parent=43 // pred_region
        %p256 = scmp.lt.s32.totalorder %s14, 1
        %s257 = scalar_select %p256, %s14, 1
        %s258 = smul.addr %s257, 2
        %s259 = smul.addr %s258, 8
        %s260 = scalar_lea.vmem %s0, %s259
      $region48: #{unet_block_forward.1} parent=43 // pred_fallthru
        _
    $region44: #{unet_block_forward.1} parent=5 // pred_fallthru
      _
    %p261 = scmp.le.s32.totalorder 1, %s14
    %p262 = scmp.lt.s32.totalorder %s14, 3
    %p263 = pnand %p261, %p262
    %p264 = pneg %p263
    // Predicated region
    $region49: #{unet_block_forward.1} parent=5 // pred_check
      _
    $region50: #{unet_block_forward.1} parent=5 // pred_check_branch
      %266 = sbr.rel (%p263) target = $region52
    $region51: #{unet_block_forward.1} parent=5 // pred_region
      %s267 = ssub.s32 %s14, 1
      %p268 = scmp.lt.s32.totalorder %s19, 1
      %s269 = scalar_select %p268, %s19, 1
      %s270 = smul.addr %s269, 2
      %s271 = smul.addr %s270, 8
      %s272 = scalar_lea.vmem %s0, %s271
      %p273 = pneg %p40
      %p274 = pneg %p37
      %p275 = pneg %p61
      %p276 = pneg %p58
      %p277 = pneg %p82
      %p278 = pneg %p79
      %p279 = pneg %p103
      %p280 = pneg %p100
      %p281 = pneg %p124
      %p282 = pneg %p121
      %p283 = pneg %p145
      %p284 = pneg %p142
      %p285 = pneg %p166
      %p286 = pneg %p163
      %p287 = pneg %p187
      %p288 = pneg %p184
      %p289 = pneg %p213
      %p290 = pneg %p210
      %p291 = scmp.lt.s32.totalorder %s19, 1
      %s292 = scalar_select %p291, %s19, 1
      %s293 = smul.addr %s292, 2
      %s294 = smul.addr %s293, 8
      %s295 = scalar_lea.vmem %s8, %s294
      %p296 = scmp.lt.s32.totalorder %s19, 1
      %s297 = scalar_select %p296, %s19, 1
      %s298 = smul.addr %s297, 2
      %s299 = smul.addr %s298, 8
      %s300 = scalar_lea.vmem %s0, %s299
      %p301 = scmp.lt.s32.totalorder %s19, 1
      %s302 = scalar_select %p301, %s19, 1
      %s303 = smul.addr %s302, 2
      %s304 = smul.addr %s303, 8
      %s305 = scalar_lea.vmem %s8, %s304
      %v306 = vld [vmem:[%s1] sm:$0xff]
      %v307 = vld [vmem:[%s1 + $0x8] sm:$0xff]
      %vm308 = vcmp.ne.f32.partialorder %v306, 0.0
      %vm309 = vcmp.ne.f32.partialorder %v307, 0.0
      %v310 = vld [vmem:[%s300] sm:$0xff]
      %v311 = vld [vmem:[%s300 + $0x8] sm:$0xff]
      %312 = vrot.lane.b32.xlu0 %v310, 17
      %v313 = vpop.permute.xlu0 %312
      %314 = vrot.lane.b32.xlu0 %v311, 17
      %v315 = vpop.permute.xlu0 %314
      %v316 = vlaneseq
      %v317 = vand.u32 %v316, 127
      %vm318 = vcmp.lt.s32.totalorder %v317, 17
      %v319 = vsel %vm318, %v313, %v315
      %v320 = vsel %vm318, %v315, %v313
      %v321 = vsel %vm308, 1, 0
      %v322 = vsel %vm309, 1, 0
      %vm323 = vcmp.eq.s32.totalorder %v321, 1
      %vm324 = vcmp.eq.s32.totalorder %v322, 1
      %v327 = vrot.slane %v320, 1
      %v328 = vrot.slane %v319, 1
      %v329 = vrot.slane %v320, 2
      %v330 = vrot.slane %v319, 2
      %v331 = vrot.slane %v320, 3
      %v332 = vrot.slane %v319, 3
      %v333 = vrot.slane %v320, 4
      %v334 = vrot.slane %v319, 4
      %v335 = vrot.slane %v320, 5
      %v336 = vrot.slane %v319, 5
      %v337 = vrot.slane %v320, 6
      %v338 = vrot.slane %v319, 6
      %v339 = vrot.slane %v320, 7
      %v340 = vrot.slane %v319, 7
      %v357 = vsel %vm323, %v320, 0.0
      %v358 = vsel %vm324, %v319, 0.0
      %v359 = vsel %vm323, %v327, 0.0
      %v360 = vsel %vm324, %v328, 0.0
      %v361 = vsel %vm323, %v329, 0.0
      %v362 = vsel %vm324, %v330, 0.0
      %v363 = vsel %vm323, %v331, 0.0
      %v364 = vsel %vm324, %v332, 0.0
      %v365 = vsel %vm323, %v333, 0.0
      %v366 = vsel %vm324, %v334, 0.0
      %v367 = vsel %vm323, %v335, 0.0
      %v368 = vsel %vm324, %v336, 0.0
      %v369 = vsel %vm323, %v337, 0.0
      %v370 = vsel %vm324, %v338, 0.0
      %v371 = vsel %vm323, %v339, 0.0
      %v372 = vsel %vm324, %v340, 0.0
      %v389 = vrot.slane %v359, 7
      %vm390 = vcmask 1041409
      %v391 = vsel %vm390, %v389, %v357
      %v392 = vrot.slane %v361, 6
      %vm393 = vcmask 1042434
      %v394 = vsel %vm393, %v392, %v391
      %v395 = vrot.slane %v363, 5
      %vm396 = vcmask 1043459
      %v397 = vsel %vm396, %v395, %v394
      %v398 = vrot.slane %v365, 4
      %vm399 = vcmask 1044484
      %v400 = vsel %vm399, %v398, %v397
      %v401 = vrot.slane %v367, 3
      %vm402 = vcmask 1045509
      %v403 = vsel %vm402, %v401, %v400
      %v404 = vrot.slane %v369, 2
      %vm405 = vcmask 1046534
      %v406 = vsel %vm405, %v404, %v403
      %v407 = vrot.slane %v371, 1
      %vm408 = vcmask 1047559
      %v409 = vsel %vm408, %v407, %v406
      %v410 = vrot.slane %v360, 7
      %v411 = vsel %vm390, %v410, %v358
      %v412 = vrot.slane %v362, 6
      %v413 = vsel %vm393, %v412, %v411
      %v414 = vrot.slane %v364, 5
      %v415 = vsel %vm396, %v414, %v413
      %v416 = vrot.slane %v366, 4
      %v417 = vsel %vm399, %v416, %v415
      %v418 = vrot.slane %v368, 3
      %v419 = vsel %vm402, %v418, %v417
      %v420 = vrot.slane %v370, 2
      %v421 = vsel %vm405, %v420, %v419
      %v422 = vrot.slane %v372, 1
      %v423 = vsel %vm408, %v422, %v421
      %426 = vst [vmem:[#allocation2] sm:$0xff] %v409
      %427 = vst [vmem:[#allocation2 + $0x8] sm:$0xff] %v423
      %428 = vrot.lane.b32.xlu0 %v310, 16
      %v429 = vpop.permute.xlu0 %428
      %430 = vrot.lane.b32.xlu0 %v311, 16
      %v431 = vpop.permute.xlu0 %430
      %vm432 = vcmp.lt.s32.totalorder %v317, 16
      %v433 = vsel %vm432, %v429, %v431
      %v434 = vsel %vm432, %v431, %v429
      %v437 = vrot.slane %v434, 7
      %v438 = vrot.slane %v433, 7
      %v439 = vrot.slane %v434, 1
      %v440 = vrot.slane %v433, 1
      %v441 = vrot.slane %v434, 2
      %v442 = vrot.slane %v433, 2
      %v443 = vrot.slane %v434, 3
      %v444 = vrot.slane %v433, 3
      %v445 = vrot.slane %v434, 4
      %v446 = vrot.slane %v433, 4
      %v447 = vrot.slane %v434, 5
      %v448 = vrot.slane %v433, 5
      %v449 = vrot.slane %v434, 6
      %v450 = vrot.slane %v433, 6
      %v467 = vsel %vm323, %v437, 0.0
      %v468 = vsel %vm324, %v438, 0.0
      %v469 = vsel %vm323, %v434, 0.0
      %v470 = vsel %vm324, %v433, 0.0
      %v471 = vsel %vm323, %v439, 0.0
      %v472 = vsel %vm324, %v440, 0.0
      %v473 = vsel %vm323, %v441, 0.0
      %v474 = vsel %vm324, %v442, 0.0
      %v475 = vsel %vm323, %v443, 0.0
      %v476 = vsel %vm324, %v444, 0.0
      %v477 = vsel %vm323, %v445, 0.0
      %v478 = vsel %vm324, %v446, 0.0
      %v479 = vsel %vm323, %v447, 0.0
      %v480 = vsel %vm324, %v448, 0.0
      %v481 = vsel %vm323, %v449, 0.0
      %v482 = vsel %vm324, %v450, 0.0
      %v499 = vrot.slane %v467, 1
      %v500 = vsel %vm390, %v469, %v499
      %v501 = vrot.slane %v471, 7
      %v502 = vsel %vm393, %v501, %v500
      %v503 = vrot.slane %v473, 6
      %v504 = vsel %vm396, %v503, %v502
      %v505 = vrot.slane %v475, 5
      %v506 = vsel %vm399, %v505, %v504
      %v507 = vrot.slane %v477, 4
      %v508 = vsel %vm402, %v507, %v506
      %v509 = vrot.slane %v479, 3
      %v510 = vsel %vm405, %v509, %v508
      %v511 = vrot.slane %v481, 2
      %v512 = vsel %vm408, %v511, %v510
      %v513 = vrot.slane %v468, 1
      %v514 = vsel %vm390, %v470, %v513
      %v515 = vrot.slane %v472, 7
      %v516 = vsel %vm393, %v515, %v514
      %v517 = vrot.slane %v474, 6
      %v518 = vsel %vm396, %v517, %v516
      %v519 = vrot.slane %v476, 5
      %v520 = vsel %vm399, %v519, %v518
      %v521 = vrot.slane %v478, 4
      %v522 = vsel %vm402, %v521, %v520
      %v523 = vrot.slane %v480, 3
      %v524 = vsel %vm405, %v523, %v522
      %v525 = vrot.slane %v482, 2
      %v526 = vsel %vm408, %v525, %v524
      %529 = vst [vmem:[#allocation2 + $0x10] sm:$0xff] %v512
      %530 = vst [vmem:[#allocation2 + $0x18] sm:$0xff] %v526
      %531 = vrot.lane.b32.xlu0 %v310, 15
      %v532 = vpop.permute.xlu0 %531
      %533 = vrot.lane.b32.xlu0 %v311, 15
      %v534 = vpop.permute.xlu0 %533
      %vm535 = vcmp.lt.s32.totalorder %v317, 15
      %v536 = vsel %vm535, %v532, %v534
      %v537 = vsel %vm535, %v534, %v532
      %v540 = vrot.slane %v537, 6
      %v541 = vrot.slane %v536, 6
      %v542 = vrot.slane %v537, 7
      %v543 = vrot.slane %v536, 7
      %v544 = vrot.slane %v537, 1
      %v545 = vrot.slane %v536, 1
      %v546 = vrot.slane %v537, 2
      %v547 = vrot.slane %v536, 2
      %v548 = vrot.slane %v537, 3
      %v549 = vrot.slane %v536, 3
      %v550 = vrot.slane %v537, 4
      %v551 = vrot.slane %v536, 4
      %v552 = vrot.slane %v537, 5
      %v553 = vrot.slane %v536, 5
      %v570 = vsel %vm323, %v540, 0.0
      %v571 = vsel %vm324, %v541, 0.0
      %v572 = vsel %vm323, %v542, 0.0
      %v573 = vsel %vm324, %v543, 0.0
      %v574 = vsel %vm323, %v537, 0.0
      %v575 = vsel %vm324, %v536, 0.0
      %v576 = vsel %vm323, %v544, 0.0
      %v577 = vsel %vm324, %v545, 0.0
      %v578 = vsel %vm323, %v546, 0.0
      %v579 = vsel %vm324, %v547, 0.0
      %v580 = vsel %vm323, %v548, 0.0
      %v581 = vsel %vm324, %v549, 0.0
      %v582 = vsel %vm323, %v550, 0.0
      %v583 = vsel %vm324, %v551, 0.0
      %v584 = vsel %vm323, %v552, 0.0
      %v585 = vsel %vm324, %v553, 0.0
      %v602 = vrot.slane %v570, 2
      %v603 = vrot.slane %v572, 1
      %v604 = vsel %vm390, %v603, %v602
      %v605 = vsel %vm393, %v574, %v604
      %v606 = vrot.slane %v576, 7
      %v607 = vsel %vm396, %v606, %v605
      %v608 = vrot.slane %v578, 6
      %v609 = vsel %vm399, %v608, %v607
      %v610 = vrot.slane %v580, 5
      %v611 = vsel %vm402, %v610, %v609
      %v612 = vrot.slane %v582, 4
      %v613 = vsel %vm405, %v612, %v611
      %v614 = vrot.slane %v584, 3
      %v615 = vsel %vm408, %v614, %v613
      %v616 = vrot.slane %v571, 2
      %v617 = vrot.slane %v573, 1
      %v618 = vsel %vm390, %v617, %v616
      %v619 = vsel %vm393, %v575, %v618
      %v620 = vrot.slane %v577, 7
      %v621 = vsel %vm396, %v620, %v619
      %v622 = vrot.slane %v579, 6
      %v623 = vsel %vm399, %v622, %v621
      %v624 = vrot.slane %v581, 5
      %v625 = vsel %vm402, %v624, %v623
      %v626 = vrot.slane %v583, 4
      %v627 = vsel %vm405, %v626, %v625
      %v628 = vrot.slane %v585, 3
      %v629 = vsel %vm408, %v628, %v627
      %632 = vst [vmem:[#allocation2 + $0x20] sm:$0xff] %v615
      %633 = vst [vmem:[#allocation2 + $0x28] sm:$0xff] %v629
      %634 = vrot.lane.b32.xlu0 %v310, 1
      %v635 = vpop.permute.xlu0 %634
      %636 = vrot.lane.b32.xlu0 %v311, 1
      %v637 = vpop.permute.xlu0 %636
      %vm638 = vcmp.lt.s32.totalorder %v317, 1
      %v639 = vsel %vm638, %v635, %v637
      %v640 = vsel %vm638, %v637, %v635
      %v643 = vrot.slane %v640, 5
      %v644 = vrot.slane %v639, 5
      %v645 = vrot.slane %v640, 6
      %v646 = vrot.slane %v639, 6
      %v647 = vrot.slane %v640, 7
      %v648 = vrot.slane %v639, 7
      %v649 = vrot.slane %v640, 1
      %v650 = vrot.slane %v639, 1
      %v651 = vrot.slane %v640, 2
      %v652 = vrot.slane %v639, 2
      %v653 = vrot.slane %v640, 3
      %v654 = vrot.slane %v639, 3
      %v655 = vrot.slane %v640, 4
      %v656 = vrot.slane %v639, 4
      %v673 = vsel %vm323, %v643, 0.0
      %v674 = vsel %vm324, %v644, 0.0
      %v675 = vsel %vm323, %v645, 0.0
      %v676 = vsel %vm324, %v646, 0.0
      %v677 = vsel %vm323, %v647, 0.0
      %v678 = vsel %vm324, %v648, 0.0
      %v679 = vsel %vm323, %v640, 0.0
      %v680 = vsel %vm324, %v639, 0.0
      %v681 = vsel %vm323, %v649, 0.0
      %v682 = vsel %vm324, %v650, 0.0
      %v683 = vsel %vm323, %v651, 0.0
      %v684 = vsel %vm324, %v652, 0.0
      %v685 = vsel %vm323, %v653, 0.0
      %v686 = vsel %vm324, %v654, 0.0
      %v687 = vsel %vm323, %v655, 0.0
      %v688 = vsel %vm324, %v656, 0.0
      %v705 = vrot.slane %v673, 3
      %v706 = vrot.slane %v675, 2
      %v707 = vsel %vm390, %v706, %v705
      %v708 = vrot.slane %v677, 1
      %v709 = vsel %vm393, %v708, %v707
      %v710 = vsel %vm396, %v679, %v709
      %v711 = vrot.slane %v681, 7
      %v712 = vsel %vm399, %v711, %v710
      %v713 = vrot.slane %v683, 6
      %v714 = vsel %vm402, %v713, %v712
      %v715 = vrot.slane %v685, 5
      %v716 = vsel %vm405, %v715, %v714
      %v717 = vrot.slane %v687, 4
      %v718 = vsel %vm408, %v717, %v716
      %v719 = vrot.slane %v674, 3
      %v720 = vrot.slane %v676, 2
      %v721 = vsel %vm390, %v720, %v719
      %v722 = vrot.slane %v678, 1
      %v723 = vsel %vm393, %v722, %v721
      %v724 = vsel %vm396, %v680, %v723
      %v725 = vrot.slane %v682, 7
      %v726 = vsel %vm399, %v725, %v724
      %v727 = vrot.slane %v684, 6
      %v728 = vsel %vm402, %v727, %v726
      %v729 = vrot.slane %v686, 5
      %v730 = vsel %vm405, %v729, %v728
      %v731 = vrot.slane %v688, 4
      %v732 = vsel %vm408, %v731, %v730
      %735 = vst [vmem:[#allocation2 + $0x30] sm:$0xff] %v718
      %736 = vst [vmem:[#allocation2 + $0x38] sm:$0xff] %v732
      %737 = vst [vmem:[#allocation2 + $0x40] sm:$0xff] %v310
      %738 = vst [vmem:[#allocation2 + $0x48] sm:$0xff] %v311
      %739 = vrot.lane.b32.xlu0 %v310, 127
      %v740 = vpop.permute.xlu0 %739
      %741 = vrot.lane.b32.xlu0 %v311, 127
      %v742 = vpop.permute.xlu0 %741
      %vm743 = vcmp.lt.s32.totalorder %v317, 127
      %v744 = vsel %vm743, %v740, %v742
      %v745 = vsel %vm743, %v742, %v740
      %v748 = vrot.slane %v744, 4
      %v749 = vrot.slane %v745, 4
      %v750 = vrot.slane %v744, 5
      %v751 = vrot.slane %v745, 5
      %v752 = vrot.slane %v744, 6
      %v753 = vrot.slane %v745, 6
      %v754 = vrot.slane %v744, 7
      %v755 = vrot.slane %v745, 7
      %v756 = vrot.slane %v744, 1
      %v757 = vrot.slane %v745, 1
      %v758 = vrot.slane %v744, 2
      %v759 = vrot.slane %v745, 2
      %v760 = vrot.slane %v744, 3
      %v761 = vrot.slane %v745, 3
      %v778 = vsel %vm323, %v748, 0.0
      %v779 = vsel %vm324, %v749, 0.0
      %v780 = vsel %vm323, %v750, 0.0
      %v781 = vsel %vm324, %v751, 0.0
      %v782 = vsel %vm323, %v752, 0.0
      %v783 = vsel %vm324, %v753, 0.0
      %v784 = vsel %vm323, %v754, 0.0
      %v785 = vsel %vm324, %v755, 0.0
      %v786 = vsel %vm323, %v744, 0.0
      %v787 = vsel %vm324, %v745, 0.0
      %v788 = vsel %vm323, %v756, 0.0
      %v789 = vsel %vm324, %v757, 0.0
      %v790 = vsel %vm323, %v758, 0.0
      %v791 = vsel %vm324, %v759, 0.0
      %v792 = vsel %vm323, %v760, 0.0
      %v793 = vsel %vm324, %v761, 0.0
      %v810 = vrot.slane %v778, 4
      %v811 = vrot.slane %v780, 3
      %v812 = vsel %vm390, %v811, %v810
      %v813 = vrot.slane %v782, 2
      %v814 = vsel %vm393, %v813, %v812
      %v815 = vrot.slane %v784, 1
      %v816 = vsel %vm396, %v815, %v814
      %v817 = vsel %vm399, %v786, %v816
      %v818 = vrot.slane %v788, 7
      %v819 = vsel %vm402, %v818, %v817
      %v820 = vrot.slane %v790, 6
      %v821 = vsel %vm405, %v820, %v819
      %v822 = vrot.slane %v792, 5
      %v823 = vsel %vm408, %v822, %v821
      %v824 = vrot.slane %v779, 4
      %v825 = vrot.slane %v781, 3
      %v826 = vsel %vm390, %v825, %v824
      %v827 = vrot.slane %v783, 2
      %v828 = vsel %vm393, %v827, %v826
      %v829 = vrot.slane %v785, 1
      %v830 = vsel %vm396, %v829, %v828
      %v831 = vsel %vm399, %v787, %v830
      %v832 = vrot.slane %v789, 7
      %v833 = vsel %vm402, %v832, %v831
      %v834 = vrot.slane %v791, 6
      %v835 = vsel %vm405, %v834, %v833
      %v836 = vrot.slane %v793, 5
      %v837 = vsel %vm408, %v836, %v835
      %840 = vst [vmem:[#allocation2 + $0x50] sm:$0xff] %v823
      %841 = vst [vmem:[#allocation2 + $0x58] sm:$0xff] %v837
      %842 = vrot.lane.b32.xlu0 %v310, 113
      %v843 = vpop.permute.xlu0 %842
      %844 = vrot.lane.b32.xlu0 %v311, 113
      %v845 = vpop.permute.xlu0 %844
      %vm846 = vcmp.lt.s32.totalorder %v317, 113
      %v847 = vsel %vm846, %v843, %v845
      %v848 = vsel %vm846, %v845, %v843
      %v851 = vrot.slane %v847, 3
      %v852 = vrot.slane %v848, 3
      %v853 = vrot.slane %v847, 4
      %v854 = vrot.slane %v848, 4
      %v855 = vrot.slane %v847, 5
      %v856 = vrot.slane %v848, 5
      %v857 = vrot.slane %v847, 6
      %v858 = vrot.slane %v848, 6
      %v859 = vrot.slane %v847, 7
      %v860 = vrot.slane %v848, 7
      %v861 = vrot.slane %v847, 1
      %v862 = vrot.slane %v848, 1
      %v863 = vrot.slane %v847, 2
      %v864 = vrot.slane %v848, 2
      %v881 = vsel %vm323, %v851, 0.0
      %v882 = vsel %vm324, %v852, 0.0
      %v883 = vsel %vm323, %v853, 0.0
      %v884 = vsel %vm324, %v854, 0.0
      %v885 = vsel %vm323, %v855, 0.0
      %v886 = vsel %vm324, %v856, 0.0
      %v887 = vsel %vm323, %v857, 0.0
      %v888 = vsel %vm324, %v858, 0.0
      %v889 = vsel %vm323, %v859, 0.0
      %v890 = vsel %vm324, %v860, 0.0
      %v891 = vsel %vm323, %v847, 0.0
      %v892 = vsel %vm324, %v848, 0.0
      %v893 = vsel %vm323, %v861, 0.0
      %v894 = vsel %vm324, %v862, 0.0
      %v895 = vsel %vm323, %v863, 0.0
      %v896 = vsel %vm324, %v864, 0.0
      %v913 = vrot.slane %v881, 5
      %v914 = vrot.slane %v883, 4
      %v915 = vsel %vm390, %v914, %v913
      %v916 = vrot.slane %v885, 3
      %v917 = vsel %vm393, %v916, %v915
      %v918 = vrot.slane %v887, 2
      %v919 = vsel %vm396, %v918, %v917
      %v920 = vrot.slane %v889, 1
      %v921 = vsel %vm399, %v920, %v919
      %v922 = vsel %vm402, %v891, %v921
      %v923 = vrot.slane %v893, 7
      %v924 = vsel %vm405, %v923, %v922
      %v925 = vrot.slane %v895, 6
      %v926 = vsel %vm408, %v925, %v924
      %v927 = vrot.slane %v882, 5
      %v928 = vrot.slane %v884, 4
      %v929 = vsel %vm390, %v928, %v927
      %v930 = vrot.slane %v886, 3
      %v931 = vsel %vm393, %v930, %v929
      %v932 = vrot.slane %v888, 2
      %v933 = vsel %vm396, %v932, %v931
      %v934 = vrot.slane %v890, 1
      %v935 = vsel %vm399, %v934, %v933
      %v936 = vsel %vm402, %v892, %v935
      %v937 = vrot.slane %v894, 7
      %v938 = vsel %vm405, %v937, %v936
      %v939 = vrot.slane %v896, 6
      %v940 = vsel %vm408, %v939, %v938
      %943 = vst [vmem:[#allocation2 + $0x60] sm:$0xff] %v926
      %944 = vst [vmem:[#allocation2 + $0x68] sm:$0xff] %v940
      %945 = vrot.lane.b32.xlu0 %v310, 112
      %v946 = vpop.permute.xlu0 %945
      %947 = vrot.lane.b32.xlu0 %v311, 112
      %v948 = vpop.permute.xlu0 %947
      %vm949 = vcmp.lt.s32.totalorder %v317, 112
      %v950 = vsel %vm949, %v946, %v948
      %v951 = vsel %vm949, %v948, %v946
      %v954 = vrot.slane %v950, 2
      %v955 = vrot.slane %v951, 2
      %v956 = vrot.slane %v950, 3
      %v957 = vrot.slane %v951, 3
      %v958 = vrot.slane %v950, 4
      %v959 = vrot.slane %v951, 4
      %v960 = vrot.slane %v950, 5
      %v961 = vrot.slane %v951, 5
      %v962 = vrot.slane %v950, 6
      %v963 = vrot.slane %v951, 6
      %v964 = vrot.slane %v950, 7
      %v965 = vrot.slane %v951, 7
      %v966 = vrot.slane %v950, 1
      %v967 = vrot.slane %v951, 1
      %v984 = vsel %vm323, %v954, 0.0
      %v985 = vsel %vm324, %v955, 0.0
      %v986 = vsel %vm323, %v956, 0.0
      %v987 = vsel %vm324, %v957, 0.0
      %v988 = vsel %vm323, %v958, 0.0
      %v989 = vsel %vm324, %v959, 0.0
      %v990 = vsel %vm323, %v960, 0.0
      %v991 = vsel %vm324, %v961, 0.0
      %v992 = vsel %vm323, %v962, 0.0
      %v993 = vsel %vm324, %v963, 0.0
      %v994 = vsel %vm323, %v964, 0.0
      %v995 = vsel %vm324, %v965, 0.0
      %v996 = vsel %vm323, %v950, 0.0
      %v997 = vsel %vm324, %v951, 0.0
      %v998 = vsel %vm323, %v966, 0.0
      %v999 = vsel %vm324, %v967, 0.0
      %v1016 = vrot.slane %v984, 6
      %v1017 = vrot.slane %v986, 5
      %v1018 = vsel %vm390, %v1017, %v1016
      %v1019 = vrot.slane %v988, 4
      %v1020 = vsel %vm393, %v1019, %v1018
      %v1021 = vrot.slane %v990, 3
      %v1022 = vsel %vm396, %v1021, %v1020
      %v1023 = vrot.slane %v992, 2
      %v1024 = vsel %vm399, %v1023, %v1022
      %v1025 = vrot.slane %v994, 1
      %v1026 = vsel %vm402, %v1025, %v1024
      %v1027 = vsel %vm405, %v996, %v1026
      %v1028 = vrot.slane %v998, 7
      %v1029 = vsel %vm408, %v1028, %v1027
      %v1030 = vrot.slane %v985, 6
      %v1031 = vrot.slane %v987, 5
      %v1032 = vsel %vm390, %v1031, %v1030
      %v1033 = vrot.slane %v989, 4
      %v1034 = vsel %vm393, %v1033, %v1032
      %v1035 = vrot.slane %v991, 3
      %v1036 = vsel %vm396, %v1035, %v1034
      %v1037 = vrot.slane %v993, 2
      %v1038 = vsel %vm399, %v1037, %v1036
      %v1039 = vrot.slane %v995, 1
      %v1040 = vsel %vm402, %v1039, %v1038
      %v1041 = vsel %vm405, %v997, %v1040
      %v1042 = vrot.slane %v999, 7
      %v1043 = vsel %vm408, %v1042, %v1041
      %1046 = vst [vmem:[#allocation2 + $0x70] sm:$0xff] %v1029
      %1047 = vst [vmem:[#allocation2 + $0x78] sm:$0xff] %v1043
      %1048 = vrot.lane.b32.xlu0 %v310, 111
      %v1049 = vpop.permute.xlu0 %1048
      %1050 = vrot.lane.b32.xlu0 %v311, 111
      %v1051 = vpop.permute.xlu0 %1050
      %vm1052 = vcmp.lt.s32.totalorder %v317, 111
      %v1053 = vsel %vm1052, %v1049, %v1051
      %v1054 = vsel %vm1052, %v1051, %v1049
      %v1057 = vrot.slane %v1053, 1
      %v1058 = vrot.slane %v1054, 1
      %v1059 = vrot.slane %v1053, 2
      %v1060 = vrot.slane %v1054, 2
      %v1061 = vrot.slane %v1053, 3
      %v1062 = vrot.slane %v1054, 3
      %v1063 = vrot.slane %v1053, 4
      %v1064 = vrot.slane %v1054, 4
      %v1065 = vrot.slane %v1053, 5
      %v1066 = vrot.slane %v1054, 5
      %v1067 = vrot.slane %v1053, 6
      %v1068 = vrot.slane %v1054, 6
      %v1069 = vrot.slane %v1053, 7
      %v1070 = vrot.slane %v1054, 7
      %v1087 = vsel %vm323, %v1057, 0.0
      %v1088 = vsel %vm324, %v1058, 0.0
      %v1089 = vsel %vm323, %v1059, 0.0
      %v1090 = vsel %vm324, %v1060, 0.0
      %v1091 = vsel %vm323, %v1061, 0.0
      %v1092 = vsel %vm324, %v1062, 0.0
      %v1093 = vsel %vm323, %v1063, 0.0
      %v1094 = vsel %vm324, %v1064, 0.0
      %v1095 = vsel %vm323, %v1065, 0.0
      %v1096 = vsel %vm324, %v1066, 0.0
      %v1097 = vsel %vm323, %v1067, 0.0
      %v1098 = vsel %vm324, %v1068, 0.0
      %v1099 = vsel %vm323, %v1069, 0.0
      %v1100 = vsel %vm324, %v1070, 0.0
      %v1101 = vsel %vm323, %v1053, 0.0
      %v1102 = vsel %vm324, %v1054, 0.0
      %v1119 = vrot.slane %v1087, 7
      %v1120 = vrot.slane %v1089, 6
      %v1121 = vsel %vm390, %v1120, %v1119
      %v1122 = vrot.slane %v1091, 5
      %v1123 = vsel %vm393, %v1122, %v1121
      %v1124 = vrot.slane %v1093, 4
      %v1125 = vsel %vm396, %v1124, %v1123
      %v1126 = vrot.slane %v1095, 3
      %v1127 = vsel %vm399, %v1126, %v1125
      %v1128 = vrot.slane %v1097, 2
      %v1129 = vsel %vm402, %v1128, %v1127
      %v1130 = vrot.slane %v1099, 1
      %v1131 = vsel %vm405, %v1130, %v1129
      %v1132 = vsel %vm408, %v1101, %v1131
      %v1133 = vrot.slane %v1088, 7
      %v1134 = vrot.slane %v1090, 6
      %v1135 = vsel %vm390, %v1134, %v1133
      %v1136 = vrot.slane %v1092, 5
      %v1137 = vsel %vm393, %v1136, %v1135
      %v1138 = vrot.slane %v1094, 4
      %v1139 = vsel %vm396, %v1138, %v1137
      %v1140 = vrot.slane %v1096, 3
      %v1141 = vsel %vm399, %v1140, %v1139
      %v1142 = vrot.slane %v1098, 2
      %v1143 = vsel %vm402, %v1142, %v1141
      %v1144 = vrot.slane %v1100, 1
      %v1145 = vsel %vm405, %v1144, %v1143
      %v1146 = vsel %vm408, %v1102, %v1145
      %1149 = vst [vmem:[#allocation2 + $0x80] sm:$0xff] %v1132
      %1150 = vst [vmem:[#allocation2 + $0x88] sm:$0xff] %v1146
      %v1151 = vld [vmem:[%s2] sm:$0xff]
      %v1152 = vld [vmem:[#allocation2] sm:$0xff]
      %v1153 = vld [vmem:[#allocation2 + $0x8] sm:$0xff]
      %v1154 = vld [vmem:[#allocation2 + $0x10] sm:$0xff]
      %v1155 = vld [vmem:[#allocation2 + $0x18] sm:$0xff]
      %v1156 = vld [vmem:[#allocation2 + $0x20] sm:$0xff]
      %v1157 = vld [vmem:[#allocation2 + $0x28] sm:$0xff]
      %v1158 = vld [vmem:[#allocation2 + $0x30] sm:$0xff]
      %v1159 = vld [vmem:[#allocation2 + $0x38] sm:$0xff]
      %v1160 = vld [vmem:[#allocation2 + $0x40] sm:$0xff]
      %v1161 = vld [vmem:[#allocation2 + $0x48] sm:$0xff]
      %v1162 = vld [vmem:[#allocation2 + $0x50] sm:$0xff]
      %v1163 = vld [vmem:[#allocation2 + $0x58] sm:$0xff]
      %v1164 = vld [vmem:[#allocation2 + $0x60] sm:$0xff]
      %v1165 = vld [vmem:[#allocation2 + $0x68] sm:$0xff]
      %v1166 = vld [vmem:[#allocation2 + $0x70] sm:$0xff]
      %v1167 = vld [vmem:[#allocation2 + $0x78] sm:$0xff]
      %v1168 = vld [vmem:[#allocation2 + $0x80] sm:$0xff]
      %v1169 = vld [vmem:[#allocation2 + $0x88] sm:$0xff]
      %vm1170 = vcmask 588800
      %v1172 = vsel %vm1170, %v1151, 0
      %1174 = vmatpush.msra.mxu0 0.0
      %1175 = vmatpush.msra.mxu0 0.0
      %1176 = vmatpush.msra.mxu0 0.0
      %1177 = vmatpush.msra.mxu0 0.0
      %1178 = vmatpush.msra.mxu0 0.0
      %1179 = vmatpush.msra.mxu0 0.0
      %1180 = vmatpush.msra.mxu0 0.0
      %1181 = vmatpush.msra.mxu0 %v1168
      %1182 = vmatpush.msra.mxu0 %v1166
      %1183 = vmatpush.msra.mxu0 %v1164
      %1184 = vmatpush.msra.mxu0 %v1162
      %1185 = vmatpush.msra.mxu0 %v1160
      %1186 = vmatpush.msra.mxu0 %v1158
      %1187 = vmatpush.msra.mxu0 %v1156
      %1188 = vmatpush.msra.mxu0 %v1154
      %1189 = vmatpush.msra.mxu0 %v1152
      %1190 = vmatmul.f32.gmra.mxu0 %v1172
      %v1191 = vpop.f32.mrf.mxu0
      %v1192 = vadd.f32 0.0, %v1191
      %1193 = vdwg.mxu0
      %1194 = vmatpush.msra.mxu0 0.0
      %1195 = vmatpush.msra.mxu0 0.0
      %1196 = vmatpush.msra.mxu0 0.0
      %1197 = vmatpush.msra.mxu0 0.0
      %1198 = vmatpush.msra.mxu0 0.0
      %1199 = vmatpush.msra.mxu0 0.0
      %1200 = vmatpush.msra.mxu0 0.0
      %1201 = vmatpush.msra.mxu0 %v1169
      %1202 = vmatpush.msra.mxu0 %v1167
      %1203 = vmatpush.msra.mxu0 %v1165
      %1204 = vmatpush.msra.mxu0 %v1163
      %1205 = vmatpush.msra.mxu0 %v1161
      %1206 = vmatpush.msra.mxu0 %v1159
      %1207 = vmatpush.msra.mxu0 %v1157
      %1208 = vmatpush.msra.mxu0 %v1155
      %1209 = vmatpush.msra.mxu0 %v1153
      %1210 = vmatmul.f32.gmra.mxu0 %v1172
      %v1211 = vpop.f32.mrf.mxu0
      %v1212 = vadd.f32 0.0, %v1211
      %1213 = vdwg.mxu0
      %v1214 = vadd.f32 %v1192, %v1212
      %1215 = vadd.xlane.f32.xlu0 %v1214
      %v1216 = vpop.xlane.xlu0 %1215
      %v1217 = vmul.f32 %v1192, %v1192
      %v1218 = vmul.f32 %v1212, %v1212
      %v1219 = vadd.f32 %v1217, %v1218
      %1220 = vadd.xlane.f32.xlu0 %v1219
      %v1221 = vpop.xlane.xlu0 %1220
      %v1222 = vmul.f32 %v1216, 0.00390625
      %v1223 = vmul.f32 %v1221, 0.00390625
      %v1224 = vmul.f32 %v1222, %v1222
      %v1225 = vsub.f32 %v1223, %v1224
      %v1226 = vmax.f32 %v1225, 0.0
      %v1227 = vadd.f32 %v1226, 1e-05
      %v1228 = vrsqrt.pop %v1227
      %v1229 = vmul.f32 %v1228, %v1227
      %v1230 = vmul.f32 %v1229, %v1228
      %v1231 = vmul.f32 0.5, %v1230
      %v1232 = vsub.f32 1.5, %v1231
      %v1233 = vmul.f32 %v1228, %v1232
      %vm1234 = vweird.f32 %v1227
      %vm1235 = vweird.f32 %v1228
      %vm1236 = vmor %vm1234, %vm1235
      %v1237 = vsel %vm1236, %v1228, %v1233
      %v1238 = vld [vmem:[%s3] sm:$0xff]
      %v1239 = vmul.f32 %v1237, %v1238
      %v1240 = vld [vmem:[%s4] sm:$0xff]
      %v1241 = vmul.f32 %v1222, %v1239
      %v1242 = vsub.f32 %v1240, %v1241
      %1244 = vset.pattern.permute.xlu0 0
      %1245 = vperm.xlu0 %1244, %v1239
      %v1246 = vpop.permute.xlu0 %1245
      %v1248 = vmul.f32 %v1192, %v1246
      %v1249 = vmul.f32 %v1212, %v1246
      %1251 = vset.pattern.permute.xlu0 0
      %1252 = vperm.xlu0 %1251, %v1242
      %v1253 = vpop.permute.xlu0 %1252
      %v1255 = vadd.f32 %v1248, %v1253
      %v1256 = vadd.f32 %v1249, %v1253
      %v1257 = vmax.f32 %v1255, 0.0
      %v1258 = vmax.f32 %v1256, 0.0
      %1259 = vrot.lane.b32.xlu0 %v1257, 17
      %v1260 = vpop.permute.xlu0 %1259
      %1261 = vrot.lane.b32.xlu0 %v1258, 17
      %v1262 = vpop.permute.xlu0 %1261
      %v1263 = vsel %vm318, %v1260, %v1262
      %v1264 = vsel %vm318, %v1262, %v1260
      %v1267 = vrot.slane %v1264, 1
      %v1268 = vrot.slane %v1263, 1
      %v1269 = vrot.slane %v1264, 2
      %v1270 = vrot.slane %v1263, 2
      %v1271 = vrot.slane %v1264, 3
      %v1272 = vrot.slane %v1263, 3
      %v1273 = vrot.slane %v1264, 4
      %v1274 = vrot.slane %v1263, 4
      %v1275 = vrot.slane %v1264, 5
      %v1276 = vrot.slane %v1263, 5
      %v1277 = vrot.slane %v1264, 6
      %v1278 = vrot.slane %v1263, 6
      %v1279 = vrot.slane %v1264, 7
      %v1280 = vrot.slane %v1263, 7
      %v1297 = vsel %vm323, %v1264, 0.0
      %v1298 = vsel %vm324, %v1263, 0.0
      %v1299 = vsel %vm323, %v1267, 0.0
      %v1300 = vsel %vm324, %v1268, 0.0
      %v1301 = vsel %vm323, %v1269, 0.0
      %v1302 = vsel %vm324, %v1270, 0.0
      %v1303 = vsel %vm323, %v1271, 0.0
      %v1304 = vsel %vm324, %v1272, 0.0
      %v1305 = vsel %vm323, %v1273, 0.0
      %v1306 = vsel %vm324, %v1274, 0.0
      %v1307 = vsel %vm323, %v1275, 0.0
      %v1308 = vsel %vm324, %v1276, 0.0
      %v1309 = vsel %vm323, %v1277, 0.0
      %v1310 = vsel %vm324, %v1278, 0.0
      %v1311 = vsel %vm323, %v1279, 0.0
      %v1312 = vsel %vm324, %v1280, 0.0
      %v1329 = vrot.slane %v1299, 7
      %v1330 = vsel %vm390, %v1329, %v1297
      %v1331 = vrot.slane %v1301, 6
      %v1332 = vsel %vm393, %v1331, %v1330
      %v1333 = vrot.slane %v1303, 5
      %v1334 = vsel %vm396, %v1333, %v1332
      %v1335 = vrot.slane %v1305, 4
      %v1336 = vsel %vm399, %v1335, %v1334
      %v1337 = vrot.slane %v1307, 3
      %v1338 = vsel %vm402, %v1337, %v1336
      %v1339 = vrot.slane %v1309, 2
      %v1340 = vsel %vm405, %v1339, %v1338
      %v1341 = vrot.slane %v1311, 1
      %v1342 = vsel %vm408, %v1341, %v1340
      %v1343 = vrot.slane %v1300, 7
      %v1344 = vsel %vm390, %v1343, %v1298
      %v1345 = vrot.slane %v1302, 6
      %v1346 = vsel %vm393, %v1345, %v1344
      %v1347 = vrot.slane %v1304, 5
      %v1348 = vsel %vm396, %v1347, %v1346
      %v1349 = vrot.slane %v1306, 4
      %v1350 = vsel %vm399, %v1349, %v1348
      %v1351 = vrot.slane %v1308, 3
      %v1352 = vsel %vm402, %v1351, %v1350
      %v1353 = vrot.slane %v1310, 2
      %v1354 = vsel %vm405, %v1353, %v1352
      %v1355 = vrot.slane %v1312, 1
      %v1356 = vsel %vm408, %v1355, %v1354
      %1359 = vst [vmem:[#allocation3] sm:$0xff] %v1342
      %1360 = vst [vmem:[#allocation3 + $0x8] sm:$0xff] %v1356
      %1361 = vrot.lane.b32.xlu0 %v1257, 16
      %v1362 = vpop.permute.xlu0 %1361
      %1363 = vrot.lane.b32.xlu0 %v1258, 16
      %v1364 = vpop.permute.xlu0 %1363
      %v1365 = vsel %vm432, %v1362, %v1364
      %v1366 = vsel %vm432, %v1364, %v1362
      %v1369 = vrot.slane %v1366, 7
      %v1370 = vrot.slane %v1365, 7
      %v1371 = vrot.slane %v1366, 1
      %v1372 = vrot.slane %v1365, 1
      %v1373 = vrot.slane %v1366, 2
      %v1374 = vrot.slane %v1365, 2
      %v1375 = vrot.slane %v1366, 3
      %v1376 = vrot.slane %v1365, 3
      %v1377 = vrot.slane %v1366, 4
      %v1378 = vrot.slane %v1365, 4
      %v1379 = vrot.slane %v1366, 5
      %v1380 = vrot.slane %v1365, 5
      %v1381 = vrot.slane %v1366, 6
      %v1382 = vrot.slane %v1365, 6
      %v1399 = vsel %vm323, %v1369, 0.0
      %v1400 = vsel %vm324, %v1370, 0.0
      %v1401 = vsel %vm323, %v1366, 0.0
      %v1402 = vsel %vm324, %v1365, 0.0
      %v1403 = vsel %vm323, %v1371, 0.0
      %v1404 = vsel %vm324, %v1372, 0.0
      %v1405 = vsel %vm323, %v1373, 0.0
      %v1406 = vsel %vm324, %v1374, 0.0
      %v1407 = vsel %vm323, %v1375, 0.0
      %v1408 = vsel %vm324, %v1376, 0.0
      %v1409 = vsel %vm323, %v1377, 0.0
      %v1410 = vsel %vm324, %v1378, 0.0
      %v1411 = vsel %vm323, %v1379, 0.0
      %v1412 = vsel %vm324, %v1380, 0.0
      %v1413 = vsel %vm323, %v1381, 0.0
      %v1414 = vsel %vm324, %v1382, 0.0
      %v1431 = vrot.slane %v1399, 1
      %v1432 = vsel %vm390, %v1401, %v1431
      %v1433 = vrot.slane %v1403, 7
      %v1434 = vsel %vm393, %v1433, %v1432
      %v1435 = vrot.slane %v1405, 6
      %v1436 = vsel %vm396, %v1435, %v1434
      %v1437 = vrot.slane %v1407, 5
      %v1438 = vsel %vm399, %v1437, %v1436
      %v1439 = vrot.slane %v1409, 4
      %v1440 = vsel %vm402, %v1439, %v1438
      %v1441 = vrot.slane %v1411, 3
      %v1442 = vsel %vm405, %v1441, %v1440
      %v1443 = vrot.slane %v1413, 2
      %v1444 = vsel %vm408, %v1443, %v1442
      %v1445 = vrot.slane %v1400, 1
      %v1446 = vsel %vm390, %v1402, %v1445
      %v1447 = vrot.slane %v1404, 7
      %v1448 = vsel %vm393, %v1447, %v1446
      %v1449 = vrot.slane %v1406, 6
      %v1450 = vsel %vm396, %v1449, %v1448
      %v1451 = vrot.slane %v1408, 5
      %v1452 = vsel %vm399, %v1451, %v1450
      %v1453 = vrot.slane %v1410, 4
      %v1454 = vsel %vm402, %v1453, %v1452
      %v1455 = vrot.slane %v1412, 3
      %v1456 = vsel %vm405, %v1455, %v1454
      %v1457 = vrot.slane %v1414, 2
      %v1458 = vsel %vm408, %v1457, %v1456
      %1461 = vst [vmem:[#allocation3 + $0x10] sm:$0xff] %v1444
      %1462 = vst [vmem:[#allocation3 + $0x18] sm:$0xff] %v1458
      %1463 = vrot.lane.b32.xlu0 %v1257, 15
      %v1464 = vpop.permute.xlu0 %1463
      %1465 = vrot.lane.b32.xlu0 %v1258, 15
      %v1466 = vpop.permute.xlu0 %1465
      %v1467 = vsel %vm535, %v1464, %v1466
      %v1468 = vsel %vm535, %v1466, %v1464
      %v1471 = vrot.slane %v1468, 6
      %v1472 = vrot.slane %v1467, 6
      %v1473 = vrot.slane %v1468, 7
      %v1474 = vrot.slane %v1467, 7
      %v1475 = vrot.slane %v1468, 1
      %v1476 = vrot.slane %v1467, 1
      %v1477 = vrot.slane %v1468, 2
      %v1478 = vrot.slane %v1467, 2
      %v1479 = vrot.slane %v1468, 3
      %v1480 = vrot.slane %v1467, 3
      %v1481 = vrot.slane %v1468, 4
      %v1482 = vrot.slane %v1467, 4
      %v1483 = vrot.slane %v1468, 5
      %v1484 = vrot.slane %v1467, 5
      %v1501 = vsel %vm323, %v1471, 0.0
      %v1502 = vsel %vm324, %v1472, 0.0
      %v1503 = vsel %vm323, %v1473, 0.0
      %v1504 = vsel %vm324, %v1474, 0.0
      %v1505 = vsel %vm323, %v1468, 0.0
      %v1506 = vsel %vm324, %v1467, 0.0
      %v1507 = vsel %vm323, %v1475, 0.0
      %v1508 = vsel %vm324, %v1476, 0.0
      %v1509 = vsel %vm323, %v1477, 0.0
      %v1510 = vsel %vm324, %v1478, 0.0
      %v1511 = vsel %vm323, %v1479, 0.0
      %v1512 = vsel %vm324, %v1480, 0.0
      %v1513 = vsel %vm323, %v1481, 0.0
      %v1514 = vsel %vm324, %v1482, 0.0
      %v1515 = vsel %vm323, %v1483, 0.0
      %v1516 = vsel %vm324, %v1484, 0.0
      %v1533 = vrot.slane %v1501, 2
      %v1534 = vrot.slane %v1503, 1
      %v1535 = vsel %vm390, %v1534, %v1533
      %v1536 = vsel %vm393, %v1505, %v1535
      %v1537 = vrot.slane %v1507, 7
      %v1538 = vsel %vm396, %v1537, %v1536
      %v1539 = vrot.slane %v1509, 6
      %v1540 = vsel %vm399, %v1539, %v1538
      %v1541 = vrot.slane %v1511, 5
      %v1542 = vsel %vm402, %v1541, %v1540
      %v1543 = vrot.slane %v1513, 4
      %v1544 = vsel %vm405, %v1543, %v1542
      %v1545 = vrot.slane %v1515, 3
      %v1546 = vsel %vm408, %v1545, %v1544
      %v1547 = vrot.slane %v1502, 2
      %v1548 = vrot.slane %v1504, 1
      %v1549 = vsel %vm390, %v1548, %v1547
      %v1550 = vsel %vm393, %v1506, %v1549
      %v1551 = vrot.slane %v1508, 7
      %v1552 = vsel %vm396, %v1551, %v1550
      %v1553 = vrot.slane %v1510, 6
      %v1554 = vsel %vm399, %v1553, %v1552
      %v1555 = vrot.slane %v1512, 5
      %v1556 = vsel %vm402, %v1555, %v1554
      %v1557 = vrot.slane %v1514, 4
      %v1558 = vsel %vm405, %v1557, %v1556
      %v1559 = vrot.slane %v1516, 3
      %v1560 = vsel %vm408, %v1559, %v1558
      %1563 = vst [vmem:[#allocation3 + $0x20] sm:$0xff] %v1546
      %1564 = vst [vmem:[#allocation3 + $0x28] sm:$0xff] %v1560
      %1565 = vrot.lane.b32.xlu0 %v1257, 1
      %v1566 = vpop.permute.xlu0 %1565
      %1567 = vrot.lane.b32.xlu0 %v1258, 1
      %v1568 = vpop.permute.xlu0 %1567
      %v1569 = vsel %vm638, %v1566, %v1568
      %v1570 = vsel %vm638, %v1568, %v1566
      %v1573 = vrot.slane %v1570, 5
      %v1574 = vrot.slane %v1569, 5
      %v1575 = vrot.slane %v1570, 6
      %v1576 = vrot.slane %v1569, 6
      %v1577 = vrot.slane %v1570, 7
      %v1578 = vrot.slane %v1569, 7
      %v1579 = vrot.slane %v1570, 1
      %v1580 = vrot.slane %v1569, 1
      %v1581 = vrot.slane %v1570, 2
      %v1582 = vrot.slane %v1569, 2
      %v1583 = vrot.slane %v1570, 3
      %v1584 = vrot.slane %v1569, 3
      %v1585 = vrot.slane %v1570, 4
      %v1586 = vrot.slane %v1569, 4
      %v1603 = vsel %vm323, %v1573, 0.0
      %v1604 = vsel %vm324, %v1574, 0.0
      %v1605 = vsel %vm323, %v1575, 0.0
      %v1606 = vsel %vm324, %v1576, 0.0
      %v1607 = vsel %vm323, %v1577, 0.0
      %v1608 = vsel %vm324, %v1578, 0.0
      %v1609 = vsel %vm323, %v1570, 0.0
      %v1610 = vsel %vm324, %v1569, 0.0
      %v1611 = vsel %vm323, %v1579, 0.0
      %v1612 = vsel %vm324, %v1580, 0.0
      %v1613 = vsel %vm323, %v1581, 0.0
      %v1614 = vsel %vm324, %v1582, 0.0
      %v1615 = vsel %vm323, %v1583, 0.0
      %v1616 = vsel %vm324, %v1584, 0.0
      %v1617 = vsel %vm323, %v1585, 0.0
      %v1618 = vsel %vm324, %v1586, 0.0
      %v1635 = vrot.slane %v1603, 3
      %v1636 = vrot.slane %v1605, 2
      %v1637 = vsel %vm390, %v1636, %v1635
      %v1638 = vrot.slane %v1607, 1
      %v1639 = vsel %vm393, %v1638, %v1637
      %v1640 = vsel %vm396, %v1609, %v1639
      %v1641 = vrot.slane %v1611, 7
      %v1642 = vsel %vm399, %v1641, %v1640
      %v1643 = vrot.slane %v1613, 6
      %v1644 = vsel %vm402, %v1643, %v1642
      %v1645 = vrot.slane %v1615, 5
      %v1646 = vsel %vm405, %v1645, %v1644
      %v1647 = vrot.slane %v1617, 4
      %v1648 = vsel %vm408, %v1647, %v1646
      %v1649 = vrot.slane %v1604, 3
      %v1650 = vrot.slane %v1606, 2
      %v1651 = vsel %vm390, %v1650, %v1649
      %v1652 = vrot.slane %v1608, 1
      %v1653 = vsel %vm393, %v1652, %v1651
      %v1654 = vsel %vm396, %v1610, %v1653
      %v1655 = vrot.slane %v1612, 7
      %v1656 = vsel %vm399, %v1655, %v1654
      %v1657 = vrot.slane %v1614, 6
      %v1658 = vsel %vm402, %v1657, %v1656
      %v1659 = vrot.slane %v1616, 5
      %v1660 = vsel %vm405, %v1659, %v1658
      %v1661 = vrot.slane %v1618, 4
      %v1662 = vsel %vm408, %v1661, %v1660
      %1665 = vst [vmem:[#allocation3 + $0x30] sm:$0xff] %v1648
      %1666 = vst [vmem:[#allocation3 + $0x38] sm:$0xff] %v1662
      %1667 = vst [vmem:[#allocation3 + $0x40] sm:$0xff] %v1257
      %1668 = vst [vmem:[#allocation3 + $0x48] sm:$0xff] %v1258
      %1669 = vrot.lane.b32.xlu0 %v1257, 127
      %v1670 = vpop.permute.xlu0 %1669
      %1671 = vrot.lane.b32.xlu0 %v1258, 127
      %v1672 = vpop.permute.xlu0 %1671
      %v1673 = vsel %vm743, %v1670, %v1672
      %v1674 = vsel %vm743, %v1672, %v1670
      %v1677 = vrot.slane %v1673, 4
      %v1678 = vrot.slane %v1674, 4
      %v1679 = vrot.slane %v1673, 5
      %v1680 = vrot.slane %v1674, 5
      %v1681 = vrot.slane %v1673, 6
      %v1682 = vrot.slane %v1674, 6
      %v1683 = vrot.slane %v1673, 7
      %v1684 = vrot.slane %v1674, 7
      %v1685 = vrot.slane %v1673, 1
      %v1686 = vrot.slane %v1674, 1
      %v1687 = vrot.slane %v1673, 2
      %v1688 = vrot.slane %v1674, 2
      %v1689 = vrot.slane %v1673, 3
      %v1690 = vrot.slane %v1674, 3
      %v1707 = vsel %vm323, %v1677, 0.0
      %v1708 = vsel %vm324, %v1678, 0.0
      %v1709 = vsel %vm323, %v1679, 0.0
      %v1710 = vsel %vm324, %v1680, 0.0
      %v1711 = vsel %vm323, %v1681, 0.0
      %v1712 = vsel %vm324, %v1682, 0.0
      %v1713 = vsel %vm323, %v1683, 0.0
      %v1714 = vsel %vm324, %v1684, 0.0
      %v1715 = vsel %vm323, %v1673, 0.0
      %v1716 = vsel %vm324, %v1674, 0.0
      %v1717 = vsel %vm323, %v1685, 0.0
      %v1718 = vsel %vm324, %v1686, 0.0
      %v1719 = vsel %vm323, %v1687, 0.0
      %v1720 = vsel %vm324, %v1688, 0.0
      %v1721 = vsel %vm323, %v1689, 0.0
      %v1722 = vsel %vm324, %v1690, 0.0
      %v1739 = vrot.slane %v1707, 4
      %v1740 = vrot.slane %v1709, 3
      %v1741 = vsel %vm390, %v1740, %v1739
      %v1742 = vrot.slane %v1711, 2
      %v1743 = vsel %vm393, %v1742, %v1741
      %v1744 = vrot.slane %v1713, 1
      %v1745 = vsel %vm396, %v1744, %v1743
      %v1746 = vsel %vm399, %v1715, %v1745
      %v1747 = vrot.slane %v1717, 7
      %v1748 = vsel %vm402, %v1747, %v1746
      %v1749 = vrot.slane %v1719, 6
      %v1750 = vsel %vm405, %v1749, %v1748
      %v1751 = vrot.slane %v1721, 5
      %v1752 = vsel %vm408, %v1751, %v1750
      %v1753 = vrot.slane %v1708, 4
      %v1754 = vrot.slane %v1710, 3
      %v1755 = vsel %vm390, %v1754, %v1753
      %v1756 = vrot.slane %v1712, 2
      %v1757 = vsel %vm393, %v1756, %v1755
      %v1758 = vrot.slane %v1714, 1
      %v1759 = vsel %vm396, %v1758, %v1757
      %v1760 = vsel %vm399, %v1716, %v1759
      %v1761 = vrot.slane %v1718, 7
      %v1762 = vsel %vm402, %v1761, %v1760
      %v1763 = vrot.slane %v1720, 6
      %v1764 = vsel %vm405, %v1763, %v1762
      %v1765 = vrot.slane %v1722, 5
      %v1766 = vsel %vm408, %v1765, %v1764
      %1769 = vst [vmem:[#allocation3 + $0x50] sm:$0xff] %v1752
      %1770 = vst [vmem:[#allocation3 + $0x58] sm:$0xff] %v1766
      %1771 = vrot.lane.b32.xlu0 %v1257, 113
      %v1772 = vpop.permute.xlu0 %1771
      %1773 = vrot.lane.b32.xlu0 %v1258, 113
      %v1774 = vpop.permute.xlu0 %1773
      %v1775 = vsel %vm846, %v1772, %v1774
      %v1776 = vsel %vm846, %v1774, %v1772
      %v1779 = vrot.slane %v1775, 3
      %v1780 = vrot.slane %v1776, 3
      %v1781 = vrot.slane %v1775, 4
      %v1782 = vrot.slane %v1776, 4
      %v1783 = vrot.slane %v1775, 5
      %v1784 = vrot.slane %v1776, 5
      %v1785 = vrot.slane %v1775, 6
      %v1786 = vrot.slane %v1776, 6
      %v1787 = vrot.slane %v1775, 7
      %v1788 = vrot.slane %v1776, 7
      %v1789 = vrot.slane %v1775, 1
      %v1790 = vrot.slane %v1776, 1
      %v1791 = vrot.slane %v1775, 2
      %v1792 = vrot.slane %v1776, 2
      %v1809 = vsel %vm323, %v1779, 0.0
      %v1810 = vsel %vm324, %v1780, 0.0
      %v1811 = vsel %vm323, %v1781, 0.0
      %v1812 = vsel %vm324, %v1782, 0.0
      %v1813 = vsel %vm323, %v1783, 0.0
      %v1814 = vsel %vm324, %v1784, 0.0
      %v1815 = vsel %vm323, %v1785, 0.0
      %v1816 = vsel %vm324, %v1786, 0.0
      %v1817 = vsel %vm323, %v1787, 0.0
      %v1818 = vsel %vm324, %v1788, 0.0
      %v1819 = vsel %vm323, %v1775, 0.0
      %v1820 = vsel %vm324, %v1776, 0.0
      %v1821 = vsel %vm323, %v1789, 0.0
      %v1822 = vsel %vm324, %v1790, 0.0
      %v1823 = vsel %vm323, %v1791, 0.0
      %v1824 = vsel %vm324, %v1792, 0.0
      %v1841 = vrot.slane %v1809, 5
      %v1842 = vrot.slane %v1811, 4
      %v1843 = vsel %vm390, %v1842, %v1841
      %v1844 = vrot.slane %v1813, 3
      %v1845 = vsel %vm393, %v1844, %v1843
      %v1846 = vrot.slane %v1815, 2
      %v1847 = vsel %vm396, %v1846, %v1845
      %v1848 = vrot.slane %v1817, 1
      %v1849 = vsel %vm399, %v1848, %v1847
      %v1850 = vsel %vm402, %v1819, %v1849
      %v1851 = vrot.slane %v1821, 7
      %v1852 = vsel %vm405, %v1851, %v1850
      %v1853 = vrot.slane %v1823, 6
      %v1854 = vsel %vm408, %v1853, %v1852
      %v1855 = vrot.slane %v1810, 5
      %v1856 = vrot.slane %v1812, 4
      %v1857 = vsel %vm390, %v1856, %v1855
      %v1858 = vrot.slane %v1814, 3
      %v1859 = vsel %vm393, %v1858, %v1857
      %v1860 = vrot.slane %v1816, 2
      %v1861 = vsel %vm396, %v1860, %v1859
      %v1862 = vrot.slane %v1818, 1
      %v1863 = vsel %vm399, %v1862, %v1861
      %v1864 = vsel %vm402, %v1820, %v1863
      %v1865 = vrot.slane %v1822, 7
      %v1866 = vsel %vm405, %v1865, %v1864
      %v1867 = vrot.slane %v1824, 6
      %v1868 = vsel %vm408, %v1867, %v1866
      %1871 = vst [vmem:[#allocation3 + $0x60] sm:$0xff] %v1854
      %1872 = vst [vmem:[#allocation3 + $0x68] sm:$0xff] %v1868
      %1873 = vrot.lane.b32.xlu0 %v1257, 112
      %v1874 = vpop.permute.xlu0 %1873
      %1875 = vrot.lane.b32.xlu0 %v1258, 112
      %v1876 = vpop.permute.xlu0 %1875
      %v1877 = vsel %vm949, %v1874, %v1876
      %v1878 = vsel %vm949, %v1876, %v1874
      %v1881 = vrot.slane %v1877, 2
      %v1882 = vrot.slane %v1878, 2
      %v1883 = vrot.slane %v1877, 3
      %v1884 = vrot.slane %v1878, 3
      %v1885 = vrot.slane %v1877, 4
      %v1886 = vrot.slane %v1878, 4
      %v1887 = vrot.slane %v1877, 5
      %v1888 = vrot.slane %v1878, 5
      %v1889 = vrot.slane %v1877, 6
      %v1890 = vrot.slane %v1878, 6
      %v1891 = vrot.slane %v1877, 7
      %v1892 = vrot.slane %v1878, 7
      %v1893 = vrot.slane %v1877, 1
      %v1894 = vrot.slane %v1878, 1
      %v1911 = vsel %vm323, %v1881, 0.0
      %v1912 = vsel %vm324, %v1882, 0.0
      %v1913 = vsel %vm323, %v1883, 0.0
      %v1914 = vsel %vm324, %v1884, 0.0
      %v1915 = vsel %vm323, %v1885, 0.0
      %v1916 = vsel %vm324, %v1886, 0.0
      %v1917 = vsel %vm323, %v1887, 0.0
      %v1918 = vsel %vm324, %v1888, 0.0
      %v1919 = vsel %vm323, %v1889, 0.0
      %v1920 = vsel %vm324, %v1890, 0.0
      %v1921 = vsel %vm323, %v1891, 0.0
      %v1922 = vsel %vm324, %v1892, 0.0
      %v1923 = vsel %vm323, %v1877, 0.0
      %v1924 = vsel %vm324, %v1878, 0.0
      %v1925 = vsel %vm323, %v1893, 0.0
      %v1926 = vsel %vm324, %v1894, 0.0
      %v1943 = vrot.slane %v1911, 6
      %v1944 = vrot.slane %v1913, 5
      %v1945 = vsel %vm390, %v1944, %v1943
      %v1946 = vrot.slane %v1915, 4
      %v1947 = vsel %vm393, %v1946, %v1945
      %v1948 = vrot.slane %v1917, 3
      %v1949 = vsel %vm396, %v1948, %v1947
      %v1950 = vrot.slane %v1919, 2
      %v1951 = vsel %vm399, %v1950, %v1949
      %v1952 = vrot.slane %v1921, 1
      %v1953 = vsel %vm402, %v1952, %v1951
      %v1954 = vsel %vm405, %v1923, %v1953
      %v1955 = vrot.slane %v1925, 7
      %v1956 = vsel %vm408, %v1955, %v1954
      %v1957 = vrot.slane %v1912, 6
      %v1958 = vrot.slane %v1914, 5
      %v1959 = vsel %vm390, %v1958, %v1957
      %v1960 = vrot.slane %v1916, 4
      %v1961 = vsel %vm393, %v1960, %v1959
      %v1962 = vrot.slane %v1918, 3
      %v1963 = vsel %vm396, %v1962, %v1961
      %v1964 = vrot.slane %v1920, 2
      %v1965 = vsel %vm399, %v1964, %v1963
      %v1966 = vrot.slane %v1922, 1
      %v1967 = vsel %vm402, %v1966, %v1965
      %v1968 = vsel %vm405, %v1924, %v1967
      %v1969 = vrot.slane %v1926, 7
      %v1970 = vsel %vm408, %v1969, %v1968
      %1973 = vst [vmem:[#allocation3 + $0x70] sm:$0xff] %v1956
      %1974 = vst [vmem:[#allocation3 + $0x78] sm:$0xff] %v1970
      %1975 = vrot.lane.b32.xlu0 %v1257, 111
      %v1976 = vpop.permute.xlu0 %1975
      %1977 = vrot.lane.b32.xlu0 %v1258, 111
      %v1978 = vpop.permute.xlu0 %1977
      %v1979 = vsel %vm1052, %v1976, %v1978
      %v1980 = vsel %vm1052, %v1978, %v1976
      %v1983 = vrot.slane %v1979, 1
      %v1984 = vrot.slane %v1980, 1
      %v1985 = vrot.slane %v1979, 2
      %v1986 = vrot.slane %v1980, 2
      %v1987 = vrot.slane %v1979, 3
      %v1988 = vrot.slane %v1980, 3
      %v1989 = vrot.slane %v1979, 4
      %v1990 = vrot.slane %v1980, 4
      %v1991 = vrot.slane %v1979, 5
      %v1992 = vrot.slane %v1980, 5
      %v1993 = vrot.slane %v1979, 6
      %v1994 = vrot.slane %v1980, 6
      %v1995 = vrot.slane %v1979, 7
      %v1996 = vrot.slane %v1980, 7
      %v2013 = vsel %vm323, %v1983, 0.0
      %v2014 = vsel %vm324, %v1984, 0.0
      %v2015 = vsel %vm323, %v1985, 0.0
      %v2016 = vsel %vm324, %v1986, 0.0
      %v2017 = vsel %vm323, %v1987, 0.0
      %v2018 = vsel %vm324, %v1988, 0.0
      %v2019 = vsel %vm323, %v1989, 0.0
      %v2020 = vsel %vm324, %v1990, 0.0
      %v2021 = vsel %vm323, %v1991, 0.0
      %v2022 = vsel %vm324, %v1992, 0.0
      %v2023 = vsel %vm323, %v1993, 0.0
      %v2024 = vsel %vm324, %v1994, 0.0
      %v2025 = vsel %vm323, %v1995, 0.0
      %v2026 = vsel %vm324, %v1996, 0.0
      %v2027 = vsel %vm323, %v1979, 0.0
      %v2028 = vsel %vm324, %v1980, 0.0
      %v2045 = vrot.slane %v2013, 7
      %v2046 = vrot.slane %v2015, 6
      %v2047 = vsel %vm390, %v2046, %v2045
      %v2048 = vrot.slane %v2017, 5
      %v2049 = vsel %vm393, %v2048, %v2047
      %v2050 = vrot.slane %v2019, 4
      %v2051 = vsel %vm396, %v2050, %v2049
      %v2052 = vrot.slane %v2021, 3
      %v2053 = vsel %vm399, %v2052, %v2051
      %v2054 = vrot.slane %v2023, 2
      %v2055 = vsel %vm402, %v2054, %v2053
      %v2056 = vrot.slane %v2025, 1
      %v2057 = vsel %vm405, %v2056, %v2055
      %v2058 = vsel %vm408, %v2027, %v2057
      %v2059 = vrot.slane %v2014, 7
      %v2060 = vrot.slane %v2016, 6
      %v2061 = vsel %vm390, %v2060, %v2059
      %v2062 = vrot.slane %v2018, 5
      %v2063 = vsel %vm393, %v2062, %v2061
      %v2064 = vrot.slane %v2020, 4
      %v2065 = vsel %vm396, %v2064, %v2063
      %v2066 = vrot.slane %v2022, 3
      %v2067 = vsel %vm399, %v2066, %v2065
      %v2068 = vrot.slane %v2024, 2
      %v2069 = vsel %vm402, %v2068, %v2067
      %v2070 = vrot.slane %v2026, 1
      %v2071 = vsel %vm405, %v2070, %v2069
      %v2072 = vsel %vm408, %v2028, %v2071
      %2075 = vst [vmem:[#allocation3 + $0x80] sm:$0xff] %v2058
      %2076 = vst [vmem:[#allocation3 + $0x88] sm:$0xff] %v2072
      %v2077 = vld [vmem:[%s5] sm:$0xff]
      %v2078 = vld [vmem:[#allocation3] sm:$0xff]
      %v2079 = vld [vmem:[#allocation3 + $0x8] sm:$0xff]
      %v2080 = vld [vmem:[#allocation3 + $0x10] sm:$0xff]
      %v2081 = vld [vmem:[#allocation3 + $0x18] sm:$0xff]
      %v2082 = vld [vmem:[#allocation3 + $0x20] sm:$0xff]
      %v2083 = vld [vmem:[#allocation3 + $0x28] sm:$0xff]
      %v2084 = vld [vmem:[#allocation3 + $0x30] sm:$0xff]
      %v2085 = vld [vmem:[#allocation3 + $0x38] sm:$0xff]
      %v2086 = vld [vmem:[#allocation3 + $0x40] sm:$0xff]
      %v2087 = vld [vmem:[#allocation3 + $0x48] sm:$0xff]
      %v2088 = vld [vmem:[#allocation3 + $0x50] sm:$0xff]
      %v2089 = vld [vmem:[#allocation3 + $0x58] sm:$0xff]
      %v2090 = vld [vmem:[#allocation3 + $0x60] sm:$0xff]
      %v2091 = vld [vmem:[#allocation3 + $0x68] sm:$0xff]
      %v2092 = vld [vmem:[#allocation3 + $0x70] sm:$0xff]
      %v2093 = vld [vmem:[#allocation3 + $0x78] sm:$0xff]
      %v2094 = vld [vmem:[#allocation3 + $0x80] sm:$0xff]
      %v2095 = vld [vmem:[#allocation3 + $0x88] sm:$0xff]
      %v2097 = vsel %vm1170, %v2077, 0
      %2099 = vmatpush.msra.mxu0 0.0
      %2100 = vmatpush.msra.mxu0 0.0
      %2101 = vmatpush.msra.mxu0 0.0
      %2102 = vmatpush.msra.mxu0 0.0
      %2103 = vmatpush.msra.mxu0 0.0
      %2104 = vmatpush.msra.mxu0 0.0
      %2105 = vmatpush.msra.mxu0 0.0
      %2106 = vmatpush.msra.mxu0 %v2094
      %2107 = vmatpush.msra.mxu0 %v2092
      %2108 = vmatpush.msra.mxu0 %v2090
      %2109 = vmatpush.msra.mxu0 %v2088
      %2110 = vmatpush.msra.mxu0 %v2086
      %2111 = vmatpush.msra.mxu0 %v2084
      %2112 = vmatpush.msra.mxu0 %v2082
      %2113 = vmatpush.msra.mxu0 %v2080
      %2114 = vmatpush.msra.mxu0 %v2078
      %2115 = vmatmul.f32.gmra.mxu0 %v2097
      %v2116 = vpop.f32.mrf.mxu0
      %v2117 = vadd.f32 0.0, %v2116
      %2118 = vdwg.mxu0
      %2119 = vmatpush.msra.mxu0 0.0
      %2120 = vmatpush.msra.mxu0 0.0
      %2121 = vmatpush.msra.mxu0 0.0
      %2122 = vmatpush.msra.mxu0 0.0
      %2123 = vmatpush.msra.mxu0 0.0
      %2124 = vmatpush.msra.mxu0 0.0
      %2125 = vmatpush.msra.mxu0 0.0
      %2126 = vmatpush.msra.mxu0 %v2095
      %2127 = vmatpush.msra.mxu0 %v2093
      %2128 = vmatpush.msra.mxu0 %v2091
      %2129 = vmatpush.msra.mxu0 %v2089
      %2130 = vmatpush.msra.mxu0 %v2087
      %2131 = vmatpush.msra.mxu0 %v2085
      %2132 = vmatpush.msra.mxu0 %v2083
      %2133 = vmatpush.msra.mxu0 %v2081
      %2134 = vmatpush.msra.mxu0 %v2079
      %2135 = vmatmul.f32.gmra.mxu0 %v2097
      %v2136 = vpop.f32.mrf.mxu0
      %v2137 = vadd.f32 0.0, %v2136
      %2138 = vdwg.mxu0
      %v2139 = vadd.f32 %v2117, %v2137
      %2140 = vadd.xlane.f32.xlu0 %v2139
      %v2141 = vpop.xlane.xlu0 %2140
      %v2142 = vmul.f32 %v2117, %v2117
      %v2143 = vmul.f32 %v2137, %v2137
      %v2144 = vadd.f32 %v2142, %v2143
      %2145 = vadd.xlane.f32.xlu0 %v2144
      %v2146 = vpop.xlane.xlu0 %2145
      %v2147 = vmul.f32 %v2141, 0.00390625
      %v2148 = vmul.f32 %v2146, 0.00390625
      %v2149 = vmul.f32 %v2147, %v2147
      %v2150 = vsub.f32 %v2148, %v2149
      %v2151 = vmax.f32 %v2150, 0.0
      %v2152 = vadd.f32 %v2151, 1e-05
      %v2153 = vrsqrt.pop %v2152
      %v2154 = vmul.f32 %v2153, %v2152
      %v2155 = vmul.f32 %v2154, %v2153
      %v2156 = vmul.f32 0.5, %v2155
      %v2157 = vsub.f32 1.5, %v2156
      %v2158 = vmul.f32 %v2153, %v2157
      %vm2159 = vweird.f32 %v2152
      %vm2160 = vweird.f32 %v2153
      %vm2161 = vmor %vm2159, %vm2160
      %v2162 = vsel %vm2161, %v2153, %v2158
      %v2163 = vld [vmem:[%s6] sm:$0xff]
      %v2164 = vmul.f32 %v2162, %v2163
      %v2165 = vld [vmem:[%s7] sm:$0xff]
      %v2166 = vmul.f32 %v2147, %v2164
      %v2167 = vsub.f32 %v2165, %v2166
      %2169 = vset.pattern.permute.xlu0 0
      %2170 = vperm.xlu0 %2169, %v2164
      %v2171 = vpop.permute.xlu0 %2170
      %v2173 = vmul.f32 %v2117, %v2171
      %v2174 = vmul.f32 %v2137, %v2171
      %2176 = vset.pattern.permute.xlu0 0
      %2177 = vperm.xlu0 %2176, %v2167
      %v2178 = vpop.permute.xlu0 %2177
      %v2180 = vadd.f32 %v2173, %v2178
      %v2181 = vadd.f32 %v2174, %v2178
      %v2182 = vmax.f32 %v2180, 0.0
      %v2183 = vmax.f32 %v2181, 0.0
      %2184 = vst [vmem:[%s305] sm:$0xff] %v2182
      %2185 = vst [vmem:[%s305 + $0x8] sm:$0xff] %v2183
      %p2186 = scmp.lt.s32.totalorder %s19, 1
      %s2187 = scalar_select %p2186, %s19, 1
      %s2188 = smul.addr %s2187, 2
      %s2189 = smul.addr %s2188, 8
      %s2190 = scalar_lea.vmem %s8, %s2189
      // Predicated region
      $region53: #{unet_block_forward.1} parent=51 // pred_check
        %p2191 = pneg %p210
      $region54: #{unet_block_forward.1} parent=51 // pred_check_branch
        %2193 = sbr.rel (%p2191) target = $region56
      $region55: #{unet_block_forward.1} parent=51 // pred_region
        _
      $region56: #{unet_block_forward.1} parent=51 // pred_fallthru
        _
    $region52: #{unet_block_forward.1} parent=5 // pred_fallthru
      _
    %p2194 = scmp.le.s32.totalorder 2, %s14
    // Predicated region
    $region57: #{unet_block_forward.1} parent=5 // pred_check
      %p2195 = pneg %p2194
    $region58: #{unet_block_forward.1} parent=5 // pred_check_branch
      %2197 = sbr.rel (%p2195) target = $region60
    $region59: #{unet_block_forward.1} parent=5 // pred_region
      %s2198 = ssub.s32 %s14, 2
      // Predicated region
      $region61: #{unet_block_forward.1} parent=59 // pred_check
        %p2199 = pneg %p216
      $region62: #{unet_block_forward.1} parent=59 // pred_check_branch
        %2201 = sbr.rel (%p2199) target = $region64
      $region63: #{unet_block_forward.1} parent=59 // pred_region
        %p2202 = scmp.lt.s32.totalorder %s20, 1
        %s2203 = scalar_select %p2202, %s20, 1
        %s2204 = smul.addr %s2203, 2
        %s2205 = smul.addr %s2204, 8
        %s2206 = scalar_lea.vmem %s8, %s2205
      $region64: #{unet_block_forward.1} parent=59 // pred_fallthru
        _
    $region60: #{unet_block_forward.1} parent=5 // pred_fallthru
      _
  $region6: #{unet_block_forward.1} parent=0 // loop_footer
    %s18 = sadd.s32 1, %s14
  $region7: #{unet_block_forward.1} parent=0 // loop_footer_branch
    %13 = sbr.rel target = $region3
  $region8: #{unet_block_forward.1} parent=0 // loop_exit
    _

</llo_original>
